<compile_context>
chip_gen: v6e
topology: v6e:2x2x1
jax: 0.10.0
libtpu: 0.0.40
codegen_flags: <defaults>
</compile_context>

<pallas_src>
import functools

import jax
import jax.numpy as jnp
from jax import lax
from jax.experimental import pallas as pl
from jax.experimental.pallas import tpu as pltpu


# Safe on v5e/v6e (128 MiB physical) and leaves headroom on v7x (64 MiB).
_VMEM_LIMIT_BYTES = 48 * 1024 * 1024


def _pick_tile(dim, target, align):
    """Largest tile <= target that divides `dim` and is a multiple of `align`.
    Falls back to the full dim (always a legal block shape)."""
    if dim <= target:
        return dim
    t = (target // align) * align
    while t >= align:
        if dim % t == 0:
            return t
        t -= align
    return dim


# ----------------------------------------------------------------------------
# Tiled linear kernel: y = x @ w_t + b   (w_t already transposed to (K, N))
# ----------------------------------------------------------------------------
def _linear_kernel(x_ref, w_ref, b_ref, o_ref, acc_ref):
    k = pl.program_id(2)

    @pl.when(k == 0)
    def _init():
        acc_ref[...] = jnp.zeros_like(acc_ref)

    acc_ref[...] += jnp.dot(x_ref[...], w_ref[...],
                            preferred_element_type=jnp.float32)

    @pl.when(k == pl.num_programs(2) - 1)
    def _store():
        o_ref[...] = (acc_ref[...] + b_ref[...]).astype(o_ref.dtype)


def pallas_linear(x, w_t, b):
    """x: (M, K) f32, w_t: (K, N) f32 pre-transposed weight, b: (N,) f32."""
    M, K = x.shape
    N = w_t.shape[1]
    tm = _pick_tile(M, 256, 8)
    tn = _pick_tile(N, 512, 128)
    tk = _pick_tile(K, 512, 128)
    grid = (M // tm, N // tn, K // tk)
    return pl.pallas_call(
        _linear_kernel,
        out_shape=jax.ShapeDtypeStruct((M, N), jnp.float32),
        grid=grid,
        in_specs=[
            pl.BlockSpec((tm, tk), lambda i, j, k: (i, k)),
            pl.BlockSpec((tk, tn), lambda i, j, k: (k, j)),
            pl.BlockSpec((1, tn), lambda i, j, k: (0, j)),
        ],
        out_specs=pl.BlockSpec((tm, tn), lambda i, j, k: (i, j)),
        scratch_shapes=[pltpu.VMEM((tm, tn), jnp.float32)],
        compiler_params=pltpu.CompilerParams(
            dimension_semantics=("parallel", "parallel", "arbitrary"),
            vmem_limit_bytes=_VMEM_LIMIT_BYTES,
        ),
    )(x, w_t, b.reshape(1, N))


# ----------------------------------------------------------------------------
# Flash-style attention over the fused (B, T, 3E) qkv tensor.
# Grid: (batch, q_tile, kv_tile).  Heads handled via static channel slices.
# ----------------------------------------------------------------------------
def _flash_attention_kernel(q_ref, k_ref, v_ref, mask_ref, o_ref,
                            acc_ref, m_ref, l_ref, *,
                            num_heads, head_dim, single_kv):
    ki = pl.program_id(2)

    q = q_ref[0]            # (tq, E)   -- query scaling folded into the weights
    k = k_ref[0]            # (tkv, E)
    v = v_ref[0]            # (tkv, E)
    mask = mask_ref[0, 0]   # (tq, tkv) additive mask
    neg_min = jnp.finfo(jnp.float32).min

    if single_kv:
        # One kv tile covers the whole sequence: plain single-pass softmax,
        # no running-max/sum bookkeeping, no rescale multiplies.
        outs = []
        for h in range(num_heads):
            sl = slice(h * head_dim, (h + 1) * head_dim)
            s = lax.dot_general(q[:, sl], k[:, sl], (((1,), (1,)), ((), ())),
                                preferred_element_type=jnp.float32) + mask
            s = jnp.maximum(s, neg_min)
            m = jnp.max(s, axis=-1, keepdims=True)
            p = jnp.exp(s - m)
            denom = jnp.sum(p, axis=-1, keepdims=True)
            pv = jnp.dot(p.astype(jnp.bfloat16), v[:, sl].astype(jnp.bfloat16),
                         preferred_element_type=jnp.float32)
            outs.append(pv * pl.reciprocal(denom, approx=True))
        o_ref[0] = jnp.concatenate(outs, axis=-1).astype(o_ref.dtype)
        return

    @pl.when(ki == 0)
    def _init():
        m_ref[...] = jnp.full_like(m_ref, -jnp.inf)
        l_ref[...] = jnp.zeros_like(l_ref)
        acc_ref[...] = jnp.zeros_like(acc_ref)

    for h in range(num_heads):
        sl = slice(h * head_dim, (h + 1) * head_dim)
        qh = q[:, sl]                                   # (tq, D)
        kh = k[:, sl]                                   # (tkv, D)
        vh = v[:, sl]                                   # (tkv, D)

        # attn_weights = Q @ K^T + attention_mask, clamped at finfo.min
        s = lax.dot_general(qh, kh, (((1,), (1,)), ((), ())),
                            preferred_element_type=jnp.float32) + mask
        s = jnp.maximum(s, neg_min)

        # online softmax update for this head
        m_prev = m_ref[h]                               # (tq, 1)
        m_new = jnp.maximum(m_prev, jnp.max(s, axis=-1, keepdims=True))
        alpha = jnp.exp(m_prev - m_new)
        p = jnp.exp(s - m_new)
        l_ref[h] = alpha * l_ref[h] + jnp.sum(p, axis=-1, keepdims=True)

        # module casts probs/values to fp16 for the bmm; use bf16 on the MXU
        pv = jnp.dot(p.astype(jnp.bfloat16), vh.astype(jnp.bfloat16),
                     preferred_element_type=jnp.float32)
        acc_ref[h] = alpha * acc_ref[h] + pv
        m_ref[h] = m_new

    @pl.when(ki == pl.num_programs(2) - 1)
    def _finalize():
        inv = pl.reciprocal(l_ref[...], approx=True)    # (H, tq, 1)
        out = jnp.concatenate(
            [acc_ref[h] * inv[h] for h in range(num_heads)], axis=-1)
        o_ref[0] = out.astype(o_ref.dtype)              # single lane-dense store


def pallas_attention(qkv, attention_mask, *, num_heads):
    """qkv: (B, T, 3E) = [q | k | v] fused, scaling already folded into q.
    attention_mask: (1 or B, 1, T, T) additive mask.  Returns (B, T, E)."""
    B, T, E3 = qkv.shape
    E = E3 // 3
    D = E // num_heads
    tq = _pick_tile(T, 256, 8)
    tkv = _pick_tile(T, 512, 128)
    n_kv = T // tkv
    grid = (B, T // tq, n_kv)
    mask_b = attention_mask.shape[0]

    if mask_b == 1:
        mask_map = lambda b, qi, ki: (0, 0, qi, ki)   # constant across batch
    else:
        mask_map = lambda b, qi, ki: (b, 0, qi, ki)

    kernel = functools.partial(_flash_attention_kernel,
                               num_heads=num_heads, head_dim=D,
                               single_kv=(n_kv == 1))

    return pl.pallas_call(
        kernel,
        out_shape=jax.ShapeDtypeStruct((B, T, E), jnp.float32),
        grid=grid,
        in_specs=[
            # channel block index 0 / 1 / 2 selects the q / k / v third
            pl.BlockSpec((1, tq, E), lambda b, qi, ki: (b, qi, 0)),
            pl.BlockSpec((1, tkv, E), lambda b, qi, ki: (b, ki, 1)),
            pl.BlockSpec((1, tkv, E), lambda b, qi, ki: (b, ki, 2)),
            pl.BlockSpec((1, 1, tq, tkv), mask_map),
        ],
        out_specs=pl.BlockSpec((1, tq, E), lambda b, qi, ki: (b, qi, 0)),
        scratch_shapes=[
            pltpu.VMEM((num_heads, tq, D), jnp.float32),   # acc
            pltpu.VMEM((num_heads, tq, 1), jnp.float32),   # running max m
            pltpu.VMEM((num_heads, tq, 1), jnp.float32),   # running sum l
        ],
        compiler_params=pltpu.CompilerParams(
            dimension_semantics=("parallel", "parallel", "arbitrary"),
            vmem_limit_bytes=_VMEM_LIMIT_BYTES,
        ),
    )(qkv, qkv, qkv, attention_mask)


# ----------------------------------------------------------------------------
# Forward pass
# ----------------------------------------------------------------------------
def prepare_params(params, num_heads):
    """One-time prep: transpose weights to (K, N), fold the query scaling into
    q_proj, and fuse q/k/v into a single (E, 3E) projection."""
    E = params["q_w"].shape[0]
    scaling = (E // num_heads) ** (-0.5)
    w_qkv = jnp.concatenate(
        [params["q_w"].T * scaling, params["k_w"].T, params["v_w"].T], axis=1)
    b_qkv = jnp.concatenate(
        [params["q_b"] * scaling, params["k_b"], params["v_b"]], axis=0)
    return {
        "w_qkv": w_qkv,             # (E, 3E)
        "b_qkv": b_qkv,             # (3E,)
        "w_out": params["o_w"].T,   # (E, E)
        "b_out": params["o_b"],     # (E,)
    }


@functools.partial(jax.jit, static_argnames=("num_heads",))
def opt_attention_forward(hidden_states, attention_mask, prepared, *, num_heads):
    """Matches OPTAttention.forward (output_attentions=False, dropout=0).

    hidden_states : (B, T, E) float32
    attention_mask: (1 or B, 1, T, T) float32 additive mask
    returns       : (B, T, E) float32 attn_output
    """
    B, T, E = hidden_states.shape
    x2d = hidden_states.reshape(B * T, E)

    qkv = pallas_linear(x2d, prepared["w_qkv"], prepared["b_qkv"])   # (B*T, 3E)
    qkv = qkv.reshape(B, T, 3 * E)                                   # pure reshape

    attn = pallas_attention(qkv, attention_mask, num_heads=num_heads)  # (B, T, E)

    out = pallas_linear(attn.reshape(B * T, E),
                        prepared["w_out"], prepared["b_out"])
    return out.reshape(B, T, E)


# ----------------------------------------------------------------------------
# Deterministic parameter init + driver
# ----------------------------------------------------------------------------
def make_params(key, embed_dim):
    ks = jax.random.split(key, 8)
    init = lambda k: 0.02 * jax.random.normal(k, (embed_dim, embed_dim), jnp.float32)
    binit = lambda k: 0.01 * jax.random.normal(k, (embed_dim,), jnp.float32)
    return {
        "q_w": init(ks[0]), "q_b": binit(ks[1]),
        "k_w": init(ks[2]), "k_b": binit(ks[3]),
        "v_w": init(ks[4]), "v_b": binit(ks[5]),
        "o_w": init(ks[6]), "o_b": binit(ks[7]),
    }


if __name__ == "__main__":
    # Small shapes consistent with the module; E is a multiple of 128 so all
    # lane-dim blocks are aligned.  head_dim = 32.
    B, T, E, H = 2, 8, 128, 4

    key = jax.random.PRNGKey(0)
    k_x, k_p = jax.random.split(key)
    hidden_states = jax.random.normal(k_x, (B, T, E), jnp.float32)
    params = make_params(k_p, E)
    prepared = prepare_params(params, H)

    # Causal additive mask; batch-invariant, so keep it (1, 1, T, T) and let the
    # kernel reuse the same block across batches (no per-batch re-DMA).
    neg = jnp.finfo(jnp.float32).min
    causal = jnp.tril(jnp.ones((T, T), dtype=bool))
    attention_mask = jnp.where(causal, 0.0, neg)[None, None].astype(jnp.float32)

    out = opt_attention_forward(hidden_states, attention_mask, prepared,
                                num_heads=H)
    jax.block_until_ready(out)

    # Pure-JAX reference (mirrors the module math, incl. the low-precision P@V
    # cast, here bf16 instead of the module's fp16).
    def ref(hs, mask, pp):
        D = E // H
        scaling = D ** (-0.5)
        x = hs.reshape(B * T, E)
        q = (x @ pp["q_w"].T + pp["q_b"]) * scaling
        k = x @ pp["k_w"].T + pp["k_b"]
        v = x @ pp["v_w"].T + pp["v_b"]
        sh = lambda t: t.reshape(B, T, H, D).transpose(0, 2, 1, 3)
        q, k, v = sh(q), sh(k), sh(v)
        s = jnp.einsum("bhqd,bhkd->bhqk", q, k) + mask
        s = jnp.maximum(s, jnp.finfo(jnp.float32).min)
        pr = jax.nn.softmax(s, axis=-1)
        pr16 = pr.astype(jnp.bfloat16).astype(jnp.float32)
        v16 = v.astype(jnp.bfloat16).astype(jnp.float32)
        o = jnp.einsum("bhqk,bhkd->bhqd", pr16, v16)
        o = o.transpose(0, 2, 1, 3).reshape(B * T, E)
        return (o @ pp["o_w"].T + pp["o_b"]).reshape(B, T, E)

    expected = ref(hidden_states, attention_mask, params)
    # tolerance covers pl.reciprocal(approx=True) and accumulation-order diffs
    assert jnp.allclose(out, expected, atol=5e-3, rtol=5e-3), "mismatch vs reference"

    print("KERNEL_OK")
</pallas_src>

<mosaic_0001>
module attributes {stable_mosaic.version = 11 : i64} {
  func.func @_linear_kernel(%arg0: i32, %arg1: i32, %arg2: i32, %arg3: memref<16x128xf32, #tpu.memory_space<vmem>>, %arg4: memref<128x128xf32, #tpu.memory_space<vmem>>, %arg5: memref<1x128xf32, #tpu.memory_space<vmem>>, %arg6: memref<16x128xf32, #tpu.memory_space<vmem>>, %arg7: memref<16x128xf32, #tpu.memory_space<vmem>>) attributes {dimension_semantics = [#tpu.dimension_semantics<parallel>, #tpu.dimension_semantics<parallel>, #tpu.dimension_semantics<arbitrary>], iteration_bounds = array<i64: 1, 1, 1>, scalar_prefetch = 0 : i64, scratch_operands = 1 : i64, tpu.core_type = #tpu.core_type<tc>, window_params = [{transform_indices = @transform_0, window_bounds = array<i64: 16, 128>}, {transform_indices = @transform_1, window_bounds = array<i64: 128, 128>}, {transform_indices = @transform_2, window_bounds = array<i64: 1, 128>}, {transform_indices = @transform_3, window_bounds = array<i64: 16, 128>}]} {
    %c0_i32 = arith.constant 0 : i32
    %0 = arith.cmpi eq, %arg2, %c0_i32 : i32
    %1 = arith.extui %0 : i1 to i32
    %c0_i32_0 = arith.constant 0 : i32
    %2 = arith.cmpi ne, %1, %c0_i32_0 : i32
    scf.if %2 {
      %cst_10 = arith.constant 0.000000e+00 : f32
      %12 = vector.broadcast %cst_10 : f32 to vector<16x128xf32>
      %c0_11 = arith.constant 0 : index
      %c0_12 = arith.constant 0 : index
      %13 = vector.load %arg7[%c0_11, %c0_12] : memref<16x128xf32, #tpu.memory_space<vmem>>, vector<16x128xf32>
      tpu.vector_store %arg7[%c0_11, %c0_12], %12 {strides = array<i32>} : memref<16x128xf32, #tpu.memory_space<vmem>>, vector<16x128xf32>,
    } else {
    }
    %c0 = arith.constant 0 : index
    %c0_1 = arith.constant 0 : index
    %3 = vector.load %arg7[%c0, %c0_1] : memref<16x128xf32, #tpu.memory_space<vmem>>, vector<16x128xf32>
    %c0_2 = arith.constant 0 : index
    %c0_3 = arith.constant 0 : index
    %4 = vector.load %arg3[%c0_2, %c0_3] : memref<16x128xf32, #tpu.memory_space<vmem>>, vector<16x128xf32>
    %c0_4 = arith.constant 0 : index
    %c0_5 = arith.constant 0 : index
    %5 = vector.load %arg4[%c0_4, %c0_5] : memref<128x128xf32, #tpu.memory_space<vmem>>, vector<128x128xf32>
    %cst = arith.constant dense<0.000000e+00> : vector<16x128xf32>
    %6 = tpu.matmul %4, %5, %cst {dimension_numbers = #tpu.dot_dimension_numbers<[1], [0], [0], [1], [0, 0, 1, 1], [], []>} : vector<16x128xf32>, vector<128x128xf32>, vector<16x128xf32> -> vector<16x128xf32>
    %7 = arith.addf %3, %6 : vector<16x128xf32>
    %c0_6 = arith.constant 0 : index
    %c0_7 = arith.constant 0 : index
    %8 = vector.load %arg7[%c0_6, %c0_7] : memref<16x128xf32, #tpu.memory_space<vmem>>, vector<16x128xf32>
    tpu.vector_store %arg7[%c0_6, %c0_7], %7 {strides = array<i32>} : memref<16x128xf32, #tpu.memory_space<vmem>>, vector<16x128xf32>,
    %c0_i32_8 = arith.constant 0 : i32
    %9 = arith.cmpi eq, %arg2, %c0_i32_8 : i32
    %10 = arith.extui %9 : i1 to i32
    %c0_i32_9 = arith.constant 0 : i32
    %11 = arith.cmpi ne, %10, %c0_i32_9 : i32
    scf.if %11 {
      %c0_10 = arith.constant 0 : index
      %c0_11 = arith.constant 0 : index
      %12 = vector.load %arg7[%c0_10, %c0_11] : memref<16x128xf32, #tpu.memory_space<vmem>>, vector<16x128xf32>
      %c0_12 = arith.constant 0 : index
      %c0_13 = arith.constant 0 : index
      %13 = vector.load %arg5[%c0_12, %c0_13] : memref<1x128xf32, #tpu.memory_space<vmem>>, vector<1x128xf32>
      %14 = vector.broadcast %13 : vector<1x128xf32> to vector<16x128xf32>
      %15 = arith.addf %12, %14 : vector<16x128xf32>
      %c0_14 = arith.constant 0 : index
      %c0_15 = arith.constant 0 : index
      %16 = vector.load %arg6[%c0_14, %c0_15] : memref<16x128xf32, #tpu.memory_space<vmem>>, vector<16x128xf32>
      tpu.vector_store %arg6[%c0_14, %c0_15], %15 {strides = array<i32>} : memref<16x128xf32, #tpu.memory_space<vmem>>, vector<16x128xf32>,
    } else {
    }
    return
  }
  func.func @transform_0(%arg0: i32, %arg1: i32, %arg2: i32) -> (i32, i32) {
    %c0_i32 = arith.constant 0 : i32
    return %arg0, %arg2 : i32, i32
  }
  func.func @transform_1(%arg0: i32, %arg1: i32, %arg2: i32) -> (i32, i32) {
    %c0_i32 = arith.constant 0 : i32
    return %arg2, %arg1 : i32, i32
  }
  func.func @transform_2(%arg0: i32, %arg1: i32, %arg2: i32) -> (i32, i32) {
    %c0_i32 = arith.constant 0 : i32
    %c0_i32_0 = arith.constant 0 : i32
    return %c0_i32, %arg1 : i32, i32
  }
  func.func @transform_3(%arg0: i32, %arg1: i32, %arg2: i32) -> (i32, i32) {
    %c0_i32 = arith.constant 0 : i32
    return %arg0, %arg1 : i32, i32
  }
}

module attributes {stable_mosaic.version = 11 : i64} {
  func.func @_flash_attention_kernel(%arg0: i32, %arg1: i32, %arg2: i32, %arg3: memref<1x8x128xf32, #tpu.memory_space<vmem>>, %arg4: memref<1x8x128xf32, #tpu.memory_space<vmem>>, %arg5: memref<1x8x128xf32, #tpu.memory_space<vmem>>, %arg6: memref<1x1x8x8xf32, #tpu.memory_space<vmem>>, %arg7: memref<1x8x128xf32, #tpu.memory_space<vmem>>, %arg8: memref<4x8x32xf32, #tpu.memory_space<vmem>>, %arg9: memref<4x8x1xf32, #tpu.memory_space<vmem>>, %arg10: memref<4x8x1xf32, #tpu.memory_space<vmem>>) attributes {dimension_semantics = [#tpu.dimension_semantics<parallel>, #tpu.dimension_semantics<parallel>, #tpu.dimension_semantics<arbitrary>], iteration_bounds = array<i64: 2, 1, 1>, scalar_prefetch = 0 : i64, scratch_operands = 3 : i64, tpu.core_type = #tpu.core_type<tc>, window_params = [{transform_indices = @transform_0, window_bounds = array<i64: 1, 8, 128>}, {transform_indices = @transform_1, window_bounds = array<i64: 1, 8, 128>}, {transform_indices = @transform_2, window_bounds = array<i64: 1, 8, 128>}, {transform_indices = @transform_3, window_bounds = array<i64: 1, 1, 8, 8>}, {transform_indices = @transform_4, window_bounds = array<i64: 1, 8, 128>}]} {
    %c0 = arith.constant 0 : index
    %c0_0 = arith.constant 0 : index
    %c0_1 = arith.constant 0 : index
    %0 = vector.load %arg3[%c0, %c0_0, %c0_1] : memref<1x8x128xf32, #tpu.memory_space<vmem>>, vector<1x8x128xf32>
    %1 = vector.shape_cast %0 : vector<1x8x128xf32> to vector<8x128xf32>
    %c0_2 = arith.constant 0 : index
    %c0_3 = arith.constant 0 : index
    %c0_4 = arith.constant 0 : index
    %2 = vector.load %arg4[%c0_2, %c0_3, %c0_4] : memref<1x8x128xf32, #tpu.memory_space<vmem>>, vector<1x8x128xf32>
    %3 = vector.shape_cast %2 : vector<1x8x128xf32> to vector<8x128xf32>
    %c0_5 = arith.constant 0 : index
    %c0_6 = arith.constant 0 : index
    %c0_7 = arith.constant 0 : index
    %4 = vector.load %arg5[%c0_5, %c0_6, %c0_7] : memref<1x8x128xf32, #tpu.memory_space<vmem>>, vector<1x8x128xf32>
    %5 = vector.shape_cast %4 : vector<1x8x128xf32> to vector<8x128xf32>
    %c0_8 = arith.constant 0 : index
    %c0_9 = arith.constant 0 : index
    %c0_10 = arith.constant 0 : index
    %c0_11 = arith.constant 0 : index
    %6 = vector.load %arg6[%c0_8, %c0_9, %c0_10, %c0_11] : memref<1x1x8x8xf32, #tpu.memory_space<vmem>>, vector<1x1x8x8xf32>
    %7 = vector.shape_cast %6 : vector<1x1x8x8xf32> to vector<8x8xf32>
    %8 = vector.extract_strided_slice %1 {offsets = [0, 0], sizes = [8, 32], strides = [1, 1]} : vector<8x128xf32> to vector<8x32xf32>
    %9 = vector.extract_strided_slice %3 {offsets = [0, 0], sizes = [8, 32], strides = [1, 1]} : vector<8x128xf32> to vector<8x32xf32>
    %cst = arith.constant dense<0.000000e+00> : vector<8x8xf32>
    %10 = tpu.matmul %8, %9, %cst {dimension_numbers = #tpu.dot_dimension_numbers<[1], [1], [0], [0], [0, 0, 1, 0], [], []>} : vector<8x32xf32>, vector<8x32xf32>, vector<8x8xf32> -> vector<8x8xf32>
    %11 = arith.addf %10, %7 : vector<8x8xf32>
    %cst_12 = arith.constant -3.40282347E+38 : f32
    %12 = vector.broadcast %cst_12 : f32 to vector<8x8xf32>
    %13 = arith.maximumf %11, %12 : vector<8x8xf32>
    %cst_13 = arith.constant dense<0xFF800000> : vector<8xf32>
    %14 = vector.multi_reduction <maximumf>, %13, %cst_13 [1] : vector<8x8xf32> to vector<8xf32>
    %15 = vector.shape_cast %14 : vector<8xf32> to vector<8x1xf32>
    %16 = vector.broadcast %15 : vector<8x1xf32> to vector<8x8xf32>
    %17 = arith.subf %13, %16 : vector<8x8xf32>
    %18 = math.exp %17 : vector<8x8xf32>
    %cst_14 = arith.constant dense<0.000000e+00> : vector<8xf32>
    %19 = vector.multi_reduction <add>, %18, %cst_14 [1] : vector<8x8xf32> to vector<8xf32>
    %20 = vector.shape_cast %19 : vector<8xf32> to vector<8x1xf32>
    %21 = arith.truncf %18 : vector<8x8xf32> to vector<8x8xbf16>
    %22 = vector.extract_strided_slice %5 {offsets = [0, 0], sizes = [8, 32], strides = [1, 1]} : vector<8x128xf32> to vector<8x32xf32>
    %23 = arith.truncf %22 : vector<8x32xf32> to vector<8x32xbf16>
    %cst_15 = arith.constant dense<0.000000e+00> : vector<8x32xf32>
    %24 = tpu.matmul %21, %23, %cst_15 {dimension_numbers = #tpu.dot_dimension_numbers<[1], [0], [0], [1], [0, 0, 1, 1], [], []>} : vector<8x8xbf16>, vector<8x32xbf16>, vector<8x32xf32> -> vector<8x32xf32>
    %25 = tpu.reciprocal %20 {approx = true} : vector<8x1xf32> -> vector<8x1xf32>
    %26 = vector.broadcast %25 : vector<8x1xf32> to vector<8x32xf32>
    %27 = arith.mulf %24, %26 : vector<8x32xf32>
    %28 = vector.extract_strided_slice %1 {offsets = [0, 32], sizes = [8, 32], strides = [1, 1]} : vector<8x128xf32> to vector<8x32xf32>
    %29 = vector.extract_strided_slice %3 {offsets = [0, 32], sizes = [8, 32], strides = [1, 1]} : vector<8x128xf32> to vector<8x32xf32>
    %cst_16 = arith.constant dense<0.000000e+00> : vector<8x8xf32>
    %30 = tpu.matmul %28, %29, %cst_16 {dimension_numbers = #tpu.dot_dimension_numbers<[1], [1], [0], [0], [0, 0, 1, 0], [], []>} : vector<8x32xf32>, vector<8x32xf32>, vector<8x8xf32> -> vector<8x8xf32>
    %31 = arith.addf %30, %7 : vector<8x8xf32>
    %cst_17 = arith.constant -3.40282347E+38 : f32
    %32 = vector.broadcast %cst_17 : f32 to vector<8x8xf32>
    %33 = arith.maximumf %31, %32 : vector<8x8xf32>
    %cst_18 = arith.constant dense<0xFF800000> : vector<8xf32>
    %34 = vector.multi_reduction <maximumf>, %33, %cst_18 [1] : vector<8x8xf32> to vector<8xf32>
    %35 = vector.shape_cast %34 : vector<8xf32> to vector<8x1xf32>
    %36 = vector.broadcast %35 : vector<8x1xf32> to vector<8x8xf32>
    %37 = arith.subf %33, %36 : vector<8x8xf32>
    %38 = math.exp %37 : vector<8x8xf32>
    %cst_19 = arith.constant dense<0.000000e+00> : vector<8xf32>
    %39 = vector.multi_reduction <add>, %38, %cst_19 [1] : vector<8x8xf32> to vector<8xf32>
    %40 = vector.shape_cast %39 : vector<8xf32> to vector<8x1xf32>
    %41 = arith.truncf %38 : vector<8x8xf32> to vector<8x8xbf16>
    %42 = vector.extract_strided_slice %5 {offsets = [0, 32], sizes = [8, 32], strides = [1, 1]} : vector<8x128xf32> to vector<8x32xf32>
    %43 = arith.truncf %42 : vector<8x32xf32> to vector<8x32xbf16>
    %cst_20 = arith.constant dense<0.000000e+00> : vector<8x32xf32>
    %44 = tpu.matmul %41, %43, %cst_20 {dimension_numbers = #tpu.dot_dimension_numbers<[1], [0], [0], [1], [0, 0, 1, 1], [], []>} : vector<8x8xbf16>, vector<8x32xbf16>, vector<8x32xf32> -> vector<8x32xf32>
    %45 = tpu.reciprocal %40 {approx = true} : vector<8x1xf32> -> vector<8x1xf32>
    %46 = vector.broadcast %45 : vector<8x1xf32> to vector<8x32xf32>
    %47 = arith.mulf %44, %46 : vector<8x32xf32>
    %48 = vector.extract_strided_slice %1 {offsets = [0, 64], sizes = [8, 32], strides = [1, 1]} : vector<8x128xf32> to vector<8x32xf32>
    %49 = vector.extract_strided_slice %3 {offsets = [0, 64], sizes = [8, 32], strides = [1, 1]} : vector<8x128xf32> to vector<8x32xf32>
    %cst_21 = arith.constant dense<0.000000e+00> : vector<8x8xf32>
    %50 = tpu.matmul %48, %49, %cst_21 {dimension_numbers = #tpu.dot_dimension_numbers<[1], [1], [0], [0], [0, 0, 1, 0], [], []>} : vector<8x32xf32>, vector<8x32xf32>, vector<8x8xf32> -> vector<8x8xf32>
    %51 = arith.addf %50, %7 : vector<8x8xf32>
    %cst_22 = arith.constant -3.40282347E+38 : f32
    %52 = vector.broadcast %cst_22 : f32 to vector<8x8xf32>
    %53 = arith.maximumf %51, %52 : vector<8x8xf32>
    %cst_23 = arith.constant dense<0xFF800000> : vector<8xf32>
    %54 = vector.multi_reduction <maximumf>, %53, %cst_23 [1] : vector<8x8xf32> to vector<8xf32>
    %55 = vector.shape_cast %54 : vector<8xf32> to vector<8x1xf32>
    %56 = vector.broadcast %55 : vector<8x1xf32> to vector<8x8xf32>
    %57 = arith.subf %53, %56 : vector<8x8xf32>
    %58 = math.exp %57 : vector<8x8xf32>
    %cst_24 = arith.constant dense<0.000000e+00> : vector<8xf32>
    %59 = vector.multi_reduction <add>, %58, %cst_24 [1] : vector<8x8xf32> to vector<8xf32>
    %60 = vector.shape_cast %59 : vector<8xf32> to vector<8x1xf32>
    %61 = arith.truncf %58 : vector<8x8xf32> to vector<8x8xbf16>
    %62 = vector.extract_strided_slice %5 {offsets = [0, 64], sizes = [8, 32], strides = [1, 1]} : vector<8x128xf32> to vector<8x32xf32>
    %63 = arith.truncf %62 : vector<8x32xf32> to vector<8x32xbf16>
    %cst_25 = arith.constant dense<0.000000e+00> : vector<8x32xf32>
    %64 = tpu.matmul %61, %63, %cst_25 {dimension_numbers = #tpu.dot_dimension_numbers<[1], [0], [0], [1], [0, 0, 1, 1], [], []>} : vector<8x8xbf16>, vector<8x32xbf16>, vector<8x32xf32> -> vector<8x32xf32>
    %65 = tpu.reciprocal %60 {approx = true} : vector<8x1xf32> -> vector<8x1xf32>
    %66 = vector.broadcast %65 : vector<8x1xf32> to vector<8x32xf32>
    %67 = arith.mulf %64, %66 : vector<8x32xf32>
    %68 = vector.extract_strided_slice %1 {offsets = [0, 96], sizes = [8, 32], strides = [1, 1]} : vector<8x128xf32> to vector<8x32xf32>
    %69 = vector.extract_strided_slice %3 {offsets = [0, 96], sizes = [8, 32], strides = [1, 1]} : vector<8x128xf32> to vector<8x32xf32>
    %cst_26 = arith.constant dense<0.000000e+00> : vector<8x8xf32>
    %70 = tpu.matmul %68, %69, %cst_26 {dimension_numbers = #tpu.dot_dimension_numbers<[1], [1], [0], [0], [0, 0, 1, 0], [], []>} : vector<8x32xf32>, vector<8x32xf32>, vector<8x8xf32> -> vector<8x8xf32>
    %71 = arith.addf %70, %7 : vector<8x8xf32>
    %cst_27 = arith.constant -3.40282347E+38 : f32
    %72 = vector.broadcast %cst_27 : f32 to vector<8x8xf32>
    %73 = arith.maximumf %71, %72 : vector<8x8xf32>
    %cst_28 = arith.constant dense<0xFF800000> : vector<8xf32>
    %74 = vector.multi_reduction <maximumf>, %73, %cst_28 [1] : vector<8x8xf32> to vector<8xf32>
    %75 = vector.shape_cast %74 : vector<8xf32> to vector<8x1xf32>
    %76 = vector.broadcast %75 : vector<8x1xf32> to vector<8x8xf32>
    %77 = arith.subf %73, %76 : vector<8x8xf32>
    %78 = math.exp %77 : vector<8x8xf32>
    %cst_29 = arith.constant dense<0.000000e+00> : vector<8xf32>
    %79 = vector.multi_reduction <add>, %78, %cst_29 [1] : vector<8x8xf32> to vector<8xf32>
    %80 = vector.shape_cast %79 : vector<8xf32> to vector<8x1xf32>
    %81 = arith.truncf %78 : vector<8x8xf32> to vector<8x8xbf16>
    %82 = vector.extract_strided_slice %5 {offsets = [0, 96], sizes = [8, 32], strides = [1, 1]} : vector<8x128xf32> to vector<8x32xf32>
    %83 = arith.truncf %82 : vector<8x32xf32> to vector<8x32xbf16>
    %cst_30 = arith.constant dense<0.000000e+00> : vector<8x32xf32>
    %84 = tpu.matmul %81, %83, %cst_30 {dimension_numbers = #tpu.dot_dimension_numbers<[1], [0], [0], [1], [0, 0, 1, 1], [], []>} : vector<8x8xbf16>, vector<8x32xbf16>, vector<8x32xf32> -> vector<8x32xf32>
    %85 = tpu.reciprocal %80 {approx = true} : vector<8x1xf32> -> vector<8x1xf32>
    %86 = vector.broadcast %85 : vector<8x1xf32> to vector<8x32xf32>
    %87 = arith.mulf %84, %86 : vector<8x32xf32>
    %88 = tpu.concatenate %27, %47, %67, %87 in 1 : vector<8x32xf32>, vector<8x32xf32>, vector<8x32xf32>, vector<8x32xf32> -> vector<8x128xf32>
    %c0_31 = arith.constant 0 : index
    %c0_32 = arith.constant 0 : index
    %c0_33 = arith.constant 0 : index
    %89 = vector.load %arg7[%c0_31, %c0_32, %c0_33] : memref<1x8x128xf32, #tpu.memory_space<vmem>>, vector<1x8x128xf32>
    %90 = vector.shape_cast %89 : vector<1x8x128xf32> to vector<8x128xf32>
    %91 = vector.shape_cast %88 : vector<8x128xf32> to vector<1x8x128xf32>
    tpu.vector_store %arg7[%c0_31, %c0_32, %c0_33], %91 {strides = array<i32>} : memref<1x8x128xf32, #tpu.memory_space<vmem>>, vector<1x8x128xf32>,
    return
  }
  func.func @transform_0(%arg0: i32, %arg1: i32, %arg2: i32) -> (i32, i32, i32) {
    %c0_i32 = arith.constant 0 : i32
    %c0_i32_0 = arith.constant 0 : i32
    return %arg0, %arg1, %c0_i32 : i32, i32, i32
  }
  func.func @transform_1(%arg0: i32, %arg1: i32, %arg2: i32) -> (i32, i32, i32) {
    %c1_i32 = arith.constant 1 : i32
    %c0_i32 = arith.constant 0 : i32
    return %arg0, %arg2, %c1_i32 : i32, i32, i32
  }
  func.func @transform_2(%arg0: i32, %arg1: i32, %arg2: i32) -> (i32, i32, i32) {
    %c2_i32 = arith.constant 2 : i32
    %c0_i32 = arith.constant 0 : i32
    return %arg0, %arg2, %c2_i32 : i32, i32, i32
  }
  func.func @transform_3(%arg0: i32, %arg1: i32, %arg2: i32) -> (i32, i32, i32, i32) {
    %c0_i32 = arith.constant 0 : i32
    %c0_i32_0 = arith.constant 0 : i32
    %c0_i32_1 = arith.constant 0 : i32
    return %c0_i32, %c0_i32_0, %arg1, %arg2 : i32, i32, i32, i32
  }
  func.func @transform_4(%arg0: i32, %arg1: i32, %arg2: i32) -> (i32, i32, i32) {
    %c0_i32 = arith.constant 0 : i32
    %c0_i32_0 = arith.constant 0 : i32
    return %arg0, %arg1, %c0_i32 : i32, i32, i32
  }
}

module attributes {stable_mosaic.version = 11 : i64} {
  func.func @_linear_kernel(%arg0: i32, %arg1: i32, %arg2: i32, %arg3: memref<16x128xf32, #tpu.memory_space<vmem>>, %arg4: memref<128x384xf32, #tpu.memory_space<vmem>>, %arg5: memref<1x384xf32, #tpu.memory_space<vmem>>, %arg6: memref<16x384xf32, #tpu.memory_space<vmem>>, %arg7: memref<16x384xf32, #tpu.memory_space<vmem>>) attributes {dimension_semantics = [#tpu.dimension_semantics<parallel>, #tpu.dimension_semantics<parallel>, #tpu.dimension_semantics<arbitrary>], iteration_bounds = array<i64: 1, 1, 1>, scalar_prefetch = 0 : i64, scratch_operands = 1 : i64, tpu.core_type = #tpu.core_type<tc>, window_params = [{transform_indices = @transform_0, window_bounds = array<i64: 16, 128>}, {transform_indices = @transform_1, window_bounds = array<i64: 128, 384>}, {transform_indices = @transform_2, window_bounds = array<i64: 1, 384>}, {transform_indices = @transform_3, window_bounds = array<i64: 16, 384>}]} {
    %c0_i32 = arith.constant 0 : i32
    %0 = arith.cmpi eq, %arg2, %c0_i32 : i32
    %1 = arith.extui %0 : i1 to i32
    %c0_i32_0 = arith.constant 0 : i32
    %2 = arith.cmpi ne, %1, %c0_i32_0 : i32
    scf.if %2 {
      %cst_10 = arith.constant 0.000000e+00 : f32
      %12 = vector.broadcast %cst_10 : f32 to vector<16x384xf32>
      %c0_11 = arith.constant 0 : index
      %c0_12 = arith.constant 0 : index
      %13 = vector.load %arg7[%c0_11, %c0_12] : memref<16x384xf32, #tpu.memory_space<vmem>>, vector<16x384xf32>
      tpu.vector_store %arg7[%c0_11, %c0_12], %12 {strides = array<i32>} : memref<16x384xf32, #tpu.memory_space<vmem>>, vector<16x384xf32>,
    } else {
    }
    %c0 = arith.constant 0 : index
    %c0_1 = arith.constant 0 : index
    %3 = vector.load %arg7[%c0, %c0_1] : memref<16x384xf32, #tpu.memory_space<vmem>>, vector<16x384xf32>
    %c0_2 = arith.constant 0 : index
    %c0_3 = arith.constant 0 : index
    %4 = vector.load %arg3[%c0_2, %c0_3] : memref<16x128xf32, #tpu.memory_space<vmem>>, vector<16x128xf32>
    %c0_4 = arith.constant 0 : index
    %c0_5 = arith.constant 0 : index
    %5 = vector.load %arg4[%c0_4, %c0_5] : memref<128x384xf32, #tpu.memory_space<vmem>>, vector<128x384xf32>
    %cst = arith.constant dense<0.000000e+00> : vector<16x384xf32>
    %6 = tpu.matmul %4, %5, %cst {dimension_numbers = #tpu.dot_dimension_numbers<[1], [0], [0], [1], [0, 0, 1, 1], [], []>} : vector<16x128xf32>, vector<128x384xf32>, vector<16x384xf32> -> vector<16x384xf32>
    %7 = arith.addf %3, %6 : vector<16x384xf32>
    %c0_6 = arith.constant 0 : index
    %c0_7 = arith.constant 0 : index
    %8 = vector.load %arg7[%c0_6, %c0_7] : memref<16x384xf32, #tpu.memory_space<vmem>>, vector<16x384xf32>
    tpu.vector_store %arg7[%c0_6, %c0_7], %7 {strides = array<i32>} : memref<16x384xf32, #tpu.memory_space<vmem>>, vector<16x384xf32>,
    %c0_i32_8 = arith.constant 0 : i32
    %9 = arith.cmpi eq, %arg2, %c0_i32_8 : i32
    %10 = arith.extui %9 : i1 to i32
    %c0_i32_9 = arith.constant 0 : i32
    %11 = arith.cmpi ne, %10, %c0_i32_9 : i32
    scf.if %11 {
      %c0_10 = arith.constant 0 : index
      %c0_11 = arith.constant 0 : index
      %12 = vector.load %arg7[%c0_10, %c0_11] : memref<16x384xf32, #tpu.memory_space<vmem>>, vector<16x384xf32>
      %c0_12 = arith.constant 0 : index
      %c0_13 = arith.constant 0 : index
      %13 = vector.load %arg5[%c0_12, %c0_13] : memref<1x384xf32, #tpu.memory_space<vmem>>, vector<1x384xf32>
      %14 = vector.broadcast %13 : vector<1x384xf32> to vector<16x384xf32>
      %15 = arith.addf %12, %14 : vector<16x384xf32>
      %c0_14 = arith.constant 0 : index
      %c0_15 = arith.constant 0 : index
      %16 = vector.load %arg6[%c0_14, %c0_15] : memref<16x384xf32, #tpu.memory_space<vmem>>, vector<16x384xf32>
      tpu.vector_store %arg6[%c0_14, %c0_15], %15 {strides = array<i32>} : memref<16x384xf32, #tpu.memory_space<vmem>>, vector<16x384xf32>,
    } else {
    }
    return
  }
  func.func @transform_0(%arg0: i32, %arg1: i32, %arg2: i32) -> (i32, i32) {
    %c0_i32 = arith.constant 0 : i32
    return %arg0, %arg2 : i32, i32
  }
  func.func @transform_1(%arg0: i32, %arg1: i32, %arg2: i32) -> (i32, i32) {
    %c0_i32 = arith.constant 0 : i32
    return %arg2, %arg1 : i32, i32
  }
  func.func @transform_2(%arg0: i32, %arg1: i32, %arg2: i32) -> (i32, i32) {
    %c0_i32 = arith.constant 0 : i32
    %c0_i32_0 = arith.constant 0 : i32
    return %c0_i32, %arg1 : i32, i32
  }
  func.func @transform_3(%arg0: i32, %arg1: i32, %arg2: i32) -> (i32, i32) {
    %c0_i32 = arith.constant 0 : i32
    return %arg0, %arg1 : i32, i32
  }
}

</mosaic_0001>

<llo_original>
// kernel: opt_attention_forward.5
$region0: #{opt_attention_forward.5}
  #allocation0 [shape = 'u32[]', space=smem, size = 0x4, offset = 0x4, fixed_abs, tag = 'smem constant byte address 0x4 - core index']
  #allocation1 [shape = 'u32[144,128]{1,0:T(1,128)}', space=vmem, size = 0x12000, scoped, tag = 'internal scratch']
  #allocation2 [shape = 'f32[16,128]{1,0:T(8,128)}', space=vmem, size = 0x2000, scoped, tag = 'scratch operand']
  %s0 = inlined_call_operand.vmem [shape: f32[16,128], index: 0, kind: input, shape index: {}]
  %s1 = inlined_call_operand.vmem [shape: f32[128,128], index: 1, kind: input, shape index: {}]
  %s2 = inlined_call_operand.vmem [shape: f32[1,128], index: 2, kind: input, shape index: {}]
  %s3 = inlined_call_operand.hbm [shape: f32[16,128], index: 3, kind: output, shape index: {}]
  %s4 = sld [smem:[#allocation0]]
  $region30: #{opt_attention_forward.5} parent=0
    _
  %s6 = ssub.s32 1, %s4
  %s7 = scalar_select 0, %s6, %s4
  $region1: #{opt_attention_forward.5} parent=0
    #allocation3 [shape = 'u8[8192]{0}', space=vmem, size = 0x2000, scoped, tag = 'output window, operand 0, single buffered']
    #allocation4 [shape = 's32[1]{0}', space=sflag, size = 0x4, scoped, tag = 'scoped memory for opt_attention_forward.5']
    %8 = vsyncpa [#allocation4], 0
    // Predicated region
    $region2: #{opt_attention_forward.5} parent=1 // pred_check
      _
    $region3: #{opt_attention_forward.5} parent=1 // pred_check_branch
      %10 = sbr.rel (0) target = $region5
    $region4: #{opt_attention_forward.5} parent=1 // pred_region
      _
    $region5: #{opt_attention_forward.5} parent=1 // pred_fallthru
      _
    // Predicated region
    $region6: #{opt_attention_forward.5} parent=1 // pred_check
      _
    $region7: #{opt_attention_forward.5} parent=1 // pred_check_branch
      %12 = sbr.rel (0) target = $region9
    $region8: #{opt_attention_forward.5} parent=1 // pred_region
      _
    $region9: #{opt_attention_forward.5} parent=1 // pred_fallthru
      _
    // Predicated region
    $region10: #{opt_attention_forward.5} parent=1 // pred_check
      _
    $region11: #{opt_attention_forward.5} parent=1 // pred_check_branch
      %14 = sbr.rel (0) target = $region13
    $region12: #{opt_attention_forward.5} parent=1 // pred_region
      _
    $region13: #{opt_attention_forward.5} parent=1 // pred_fallthru
      _
    %p15 = scmp.eq.s32.totalorder 0, 0
    // Predicated region
    $region14: #{opt_attention_forward.5} parent=1 // pred_check
      %p16 = pneg %p15
    $region15: #{opt_attention_forward.5} parent=1 // pred_check_branch
      %18 = sbr.rel (%p16) target = $region17
    $region16: #{opt_attention_forward.5} parent=1 // pred_region
      %19 = vst [vmem:[#allocation2] sm:$0xff] 0.0
      %20 = vst [vmem:[#allocation2 + $0x8] sm:$0xff] 0.0
    $region17: #{opt_attention_forward.5} parent=1 // pred_fallthru
      _
    %v21 = vld [vmem:[#allocation2] sm:$0xff]
    %v22 = vld [vmem:[#allocation2 + $0x8] sm:$0xff]
    %v23 = vld [vmem:[%s0] sm:$0xff]
    %v24 = vld [vmem:[%s0 + $0x8] sm:$0xff]
    %v25 = vld [vmem:[%s1] sm:$0xff]
    %v26 = vld [vmem:[%s1 + $0x8] sm:$0xff]
    %v27 = vld [vmem:[%s1 + $0x10] sm:$0xff]
    %v28 = vld [vmem:[%s1 + $0x18] sm:$0xff]
    %v29 = vld [vmem:[%s1 + $0x20] sm:$0xff]
    %v30 = vld [vmem:[%s1 + $0x28] sm:$0xff]
    %v31 = vld [vmem:[%s1 + $0x30] sm:$0xff]
    %v32 = vld [vmem:[%s1 + $0x38] sm:$0xff]
    %v33 = vld [vmem:[%s1 + $0x40] sm:$0xff]
    %v34 = vld [vmem:[%s1 + $0x48] sm:$0xff]
    %v35 = vld [vmem:[%s1 + $0x50] sm:$0xff]
    %v36 = vld [vmem:[%s1 + $0x58] sm:$0xff]
    %v37 = vld [vmem:[%s1 + $0x60] sm:$0xff]
    %v38 = vld [vmem:[%s1 + $0x68] sm:$0xff]
    %v39 = vld [vmem:[%s1 + $0x70] sm:$0xff]
    %v40 = vld [vmem:[%s1 + $0x78] sm:$0xff]
    %41 = vmatprep.subr.mxu0 0.0
    %42 = vmatpush1.msra.mxu0 %v40
    %43 = vmatprep.subr.mxu0 0.0
    %44 = vmatpush1.msra.mxu0 %v39
    %45 = vmatprep.subr.mxu0 0.0
    %46 = vmatpush1.msra.mxu0 %v38
    %47 = vmatprep.subr.mxu0 0.0
    %48 = vmatpush1.msra.mxu0 %v37
    %49 = vmatprep.subr.mxu0 0.0
    %50 = vmatpush1.msra.mxu0 %v36
    %51 = vmatprep.subr.mxu0 0.0
    %52 = vmatpush1.msra.mxu0 %v35
    %53 = vmatprep.subr.mxu0 0.0
    %54 = vmatpush1.msra.mxu0 %v34
    %55 = vmatprep.subr.mxu0 0.0
    %56 = vmatpush1.msra.mxu0 %v33
    %57 = vmatprep.subr.mxu0 0.0
    %58 = vmatpush1.msra.mxu0 %v32
    %59 = vmatprep.subr.mxu0 0.0
    %60 = vmatpush1.msra.mxu0 %v31
    %61 = vmatprep.subr.mxu0 0.0
    %62 = vmatpush1.msra.mxu0 %v30
    %63 = vmatprep.subr.mxu0 0.0
    %64 = vmatpush1.msra.mxu0 %v29
    %65 = vmatprep.subr.mxu0 0.0
    %66 = vmatpush1.msra.mxu0 %v28
    %67 = vmatprep.subr.mxu0 0.0
    %68 = vmatpush1.msra.mxu0 %v27
    %69 = vmatprep.subr.mxu0 0.0
    %70 = vmatpush1.msra.mxu0 %v26
    %71 = vmatprep.subr.mxu0 0.0
    %72 = vmatpush1.msra.mxu0 %v25
    %73 = vmatprep.subr.mxu0 0.0
    %74 = vmatpush2.msra.mxu0 0.0
    %75 = vmatprep.subr.mxu0 0.0
    %76 = vmatpush2.msra.mxu0 0.0
    %77 = vmatprep.subr.mxu0 0.0
    %78 = vmatpush2.msra.mxu0 0.0
    %79 = vmatprep.subr.mxu0 0.0
    %80 = vmatpush2.msra.mxu0 0.0
    %81 = vmatprep.subr.mxu0 0.0
    %82 = vmatpush2.msra.mxu0 0.0
    %83 = vmatprep.subr.mxu0 0.0
    %84 = vmatpush2.msra.mxu0 0.0
    %85 = vmatprep.subr.mxu0 0.0
    %86 = vmatpush2.msra.mxu0 0.0
    %87 = vmatprep.subr.mxu0 0.0
    %88 = vmatpush2.msra.mxu0 0.0
    %89 = vmatprep.subr.mxu0 0.0
    %90 = vmatpush2.msra.mxu0 0.0
    %91 = vmatprep.subr.mxu0 0.0
    %92 = vmatpush2.msra.mxu0 0.0
    %93 = vmatprep.subr.mxu0 0.0
    %94 = vmatpush2.msra.mxu0 0.0
    %95 = vmatprep.subr.mxu0 0.0
    %96 = vmatpush2.msra.mxu0 0.0
    %97 = vmatprep.subr.mxu0 0.0
    %98 = vmatpush2.msra.mxu0 0.0
    %99 = vmatprep.subr.mxu0 0.0
    %100 = vmatpush2.msra.mxu0 0.0
    %101 = vmatprep.subr.mxu0 0.0
    %102 = vmatpush2.msra.mxu0 0.0
    %103 = vmatprep.subr.mxu0 0.0
    %104 = vmatpush2.msra.mxu0 0.0
    %105 = vmatprep.mubr.f32.mxu0 0.0
    %106 = vmatmul.mubr.f32.gmra.mxu0 %v23
    %v107 = vpop.f32.mrf.mxu0
    %v108 = vadd.f32 0.0, %v107
    %v109 = vpop.f32.mrf.mxu0
    %110 = vmatprep.mubr.f32.mxu0 0.0
    %111 = vmatmul.mubr.f32.gmra.mxu0 %v24
    %v112 = vpop.f32.mrf.mxu0
    %v113 = vadd.f32 0.0, %v112
    %v114 = vpop.f32.mrf.mxu0
    %115 = vdwg.mxu0
    %v116 = vadd.f32 %v21, %v108
    %v117 = vadd.f32 %v22, %v113
    %118 = vst [vmem:[#allocation2] sm:$0xff] %v116
    %119 = vst [vmem:[#allocation2 + $0x8] sm:$0xff] %v117
    // Predicated region
    $region18: #{opt_attention_forward.5} parent=1 // pred_check
      %p120 = pneg %p15
    $region19: #{opt_attention_forward.5} parent=1 // pred_check_branch
      %122 = sbr.rel (%p120) target = $region21
    $region20: #{opt_attention_forward.5} parent=1 // pred_region
      %v123 = vld [vmem:[#allocation2] sm:$0xff]
      %v124 = vld [vmem:[#allocation2 + $0x8] sm:$0xff]
      %v125 = vld [vmem:[%s2] sm:$0x1]
      %v127 = vlaneseq
      %v128 = vshrl.u32 %v127, 7
      %v129 = vsub.s32 0, %v128
      %v130 = vrot.slane %v125, %v129
      %v132 = vadd.f32 %v123, %v130
      %v133 = vadd.f32 %v124, %v130
      %134 = vst [vmem:[#allocation3] sm:$0xff] %v132
      %135 = vst [vmem:[#allocation3 + $0x8] sm:$0xff] %v133
    $region21: #{opt_attention_forward.5} parent=1 // pred_fallthru
      _
    // Predicated region
    $region22: #{opt_attention_forward.5} parent=1 // pred_check
      _
    $region23: #{opt_attention_forward.5} parent=1 // pred_check_branch
      %137 = sbr.rel (0) target = $region25
    $region24: #{opt_attention_forward.5} parent=1 // pred_region
      %s139 = ssub.s32 256, 256
      %140 = vsyncadd [#allocation4], %s139
      %s141 = sshll.u32 [#allocation3], 4
      %s142 = int_to_ptr.vmem [resolvable:$true] %s141
      %147 = dma.vmem_to_hbm [thread:$0]  %s142, 256, %s3, [#allocation4], 128, 128, 8
    $region25: #{opt_attention_forward.5} parent=1 // pred_fallthru
      _
    // Predicated region
    $region26: #{opt_attention_forward.5} parent=1 // pred_check
      _
    $region27: #{opt_attention_forward.5} parent=1 // pred_check_branch
      %149 = sbr.rel (0) target = $region29
    $region28: #{opt_attention_forward.5} parent=1 // pred_region
      %150 = dma.done [#allocation4], 256
    $region29: #{opt_attention_forward.5} parent=1 // pred_fallthru
      _
    %151 = vsyncpa [#allocation4], 1

// kernel: opt_attention_forward.3
$region0: #{opt_attention_forward.3}
  #allocation0 [shape = 'u32[]', space=smem, size = 0x4, offset = 0x4, fixed_abs, tag = 'smem constant byte address 0x4 - core index']
  #allocation1 [shape = 'u32[144,128]{1,0:T(1,128)}', space=vmem, size = 0x12000, scoped, tag = 'internal scratch']
  #allocation2 [shape = 'f32[16,384]{1,0:T(8,128)}', space=vmem, size = 0x6000, scoped, tag = 'scratch operand']
  %s0 = inlined_call_operand.hbm [shape: f32[16,128], index: 0, kind: input, shape index: {}]
  %s1 = inlined_call_operand.hbm [shape: f32[128,384], index: 1, kind: input, shape index: {}]
  %s2 = inlined_call_operand.vmem [shape: f32[1,384], index: 2, kind: input, shape index: {}]
  %s3 = inlined_call_operand.vmem [shape: f32[16,384], index: 3, kind: output, shape index: {}]
  %s4 = sld [smem:[#allocation0]]
  $region38: #{opt_attention_forward.3} parent=0
    _
  %s6 = ssub.s32 1, %s4
  %s7 = scalar_select 0, %s6, %s4
  $region1: #{opt_attention_forward.3} parent=0
    #allocation3 [shape = 'u8[8192]{0}', space=vmem, size = 0x2000, scoped, tag = 'input window, operand 0, single buffered']
    #allocation4 [shape = 's32[1]{0}', space=sflag, size = 0x4, scoped, tag = 'scoped memory for opt_attention_forward.3']
    #allocation5 [shape = 'u8[196608]{0}', space=vmem, size = 0x30000, scoped, tag = 'input window, operand 1, single buffered']
    #allocation6 [shape = 's32[1]{0}', space=sflag, size = 0x4, scoped, tag = 'scoped memory for opt_attention_forward.3']
    %8 = vsyncpa [#allocation4], 0
    %9 = vsyncpa [#allocation6], 0
    // Predicated region
    $region2: #{opt_attention_forward.3} parent=1 // pred_check
      _
    $region3: #{opt_attention_forward.3} parent=1 // pred_check_branch
      %11 = sbr.rel (0) target = $region5
    $region4: #{opt_attention_forward.3} parent=1 // pred_region
      %s13 = ssub.s32 256, 256
      %14 = vsyncadd [#allocation4], %s13
      %s15 = sshll.u32 [#allocation3], 4
      %s16 = int_to_ptr.vmem [resolvable:$true] %s15
      %21 = dma.hbm_to_vmem [thread:$0]  %s0, 256, %s16, [#allocation4], 128, 128, 8
    $region5: #{opt_attention_forward.3} parent=1 // pred_fallthru
      _
    // Predicated region
    $region6: #{opt_attention_forward.3} parent=1 // pred_check
      _
    $region7: #{opt_attention_forward.3} parent=1 // pred_check_branch
      %23 = sbr.rel (0) target = $region9
    $region8: #{opt_attention_forward.3} parent=1 // pred_region
      %s25 = ssub.s32 6144, 6144
      %26 = vsyncadd [#allocation6], %s25
      %s27 = sshll.u32 [#allocation5], 4
      %s28 = int_to_ptr.vmem [resolvable:$true] %s27
      %33 = dma.hbm_to_vmem [thread:$0]  %s1, 6144, %s28, [#allocation6], 384, 384, 24
    $region9: #{opt_attention_forward.3} parent=1 // pred_fallthru
      _
    // Predicated region
    $region10: #{opt_attention_forward.3} parent=1 // pred_check
      _
    $region11: #{opt_attention_forward.3} parent=1 // pred_check_branch
      %35 = sbr.rel (0) target = $region13
    $region12: #{opt_attention_forward.3} parent=1 // pred_region
      _
    $region13: #{opt_attention_forward.3} parent=1 // pred_fallthru
      _
    // Predicated region
    $region14: #{opt_attention_forward.3} parent=1 // pred_check
      _
    $region15: #{opt_attention_forward.3} parent=1 // pred_check_branch
      %37 = sbr.rel (0) target = $region17
    $region16: #{opt_attention_forward.3} parent=1 // pred_region
      %38 = dma.done [#allocation4], 256
    $region17: #{opt_attention_forward.3} parent=1 // pred_fallthru
      _
    // Predicated region
    $region18: #{opt_attention_forward.3} parent=1 // pred_check
      _
    $region19: #{opt_attention_forward.3} parent=1 // pred_check_branch
      %40 = sbr.rel (0) target = $region21
    $region20: #{opt_attention_forward.3} parent=1 // pred_region
      %41 = dma.done [#allocation6], 6144
    $region21: #{opt_attention_forward.3} parent=1 // pred_fallthru
      _
    %p42 = scmp.eq.s32.totalorder 0, 0
    // Predicated region
    $region22: #{opt_attention_forward.3} parent=1 // pred_check
      %p43 = pneg %p42
    $region23: #{opt_attention_forward.3} parent=1 // pred_check_branch
      %45 = sbr.rel (%p43) target = $region25
    $region24: #{opt_attention_forward.3} parent=1 // pred_region
      %46 = vst [vmem:[#allocation2] sm:$0xff] 0.0
      %47 = vst [vmem:[#allocation2 + $0x8] sm:$0xff] 0.0
      %48 = vst [vmem:[#allocation2 + $0x10] sm:$0xff] 0.0
      %49 = vst [vmem:[#allocation2 + $0x18] sm:$0xff] 0.0
      %50 = vst [vmem:[#allocation2 + $0x20] sm:$0xff] 0.0
      %51 = vst [vmem:[#allocation2 + $0x28] sm:$0xff] 0.0
    $region25: #{opt_attention_forward.3} parent=1 // pred_fallthru
      _
    %v52 = vld [vmem:[#allocation2] sm:$0xff]
    %v53 = vld [vmem:[#allocation2 + $0x8] sm:$0xff]
    %v54 = vld [vmem:[#allocation2 + $0x10] sm:$0xff]
    %v55 = vld [vmem:[#allocation2 + $0x18] sm:$0xff]
    %v56 = vld [vmem:[#allocation2 + $0x20] sm:$0xff]
    %v57 = vld [vmem:[#allocation2 + $0x28] sm:$0xff]
    %v58 = vld [vmem:[#allocation3] sm:$0xff]
    %v59 = vld [vmem:[#allocation3 + $0x8] sm:$0xff]
    %v60 = vld [vmem:[#allocation5] sm:$0xff]
    %v61 = vld [vmem:[#allocation5 + $0x8] sm:$0xff]
    %v62 = vld [vmem:[#allocation5 + $0x10] sm:$0xff]
    %v63 = vld [vmem:[#allocation5 + $0x18] sm:$0xff]
    %v64 = vld [vmem:[#allocation5 + $0x20] sm:$0xff]
    %v65 = vld [vmem:[#allocation5 + $0x28] sm:$0xff]
    %v66 = vld [vmem:[#allocation5 + $0x30] sm:$0xff]
    %v67 = vld [vmem:[#allocation5 + $0x38] sm:$0xff]
    %v68 = vld [vmem:[#allocation5 + $0x40] sm:$0xff]
    %v69 = vld [vmem:[#allocation5 + $0x48] sm:$0xff]
    %v70 = vld [vmem:[#allocation5 + $0x50] sm:$0xff]
    %v71 = vld [vmem:[#allocation5 + $0x58] sm:$0xff]
    %v72 = vld [vmem:[#allocation5 + $0x60] sm:$0xff]
    %v73 = vld [vmem:[#allocation5 + $0x68] sm:$0xff]
    %v74 = vld [vmem:[#allocation5 + $0x70] sm:$0xff]
    %v75 = vld [vmem:[#allocation5 + $0x78] sm:$0xff]
    %v76 = vld [vmem:[#allocation5 + $0x80] sm:$0xff]
    %v77 = vld [vmem:[#allocation5 + $0x88] sm:$0xff]
    %v78 = vld [vmem:[#allocation5 + $0x90] sm:$0xff]
    %v79 = vld [vmem:[#allocation5 + $0x98] sm:$0xff]
    %v80 = vld [vmem:[#allocation5 + $0xa0] sm:$0xff]
    %v81 = vld [vmem:[#allocation5 + $0xa8] sm:$0xff]
    %v82 = vld [vmem:[#allocation5 + $0xb0] sm:$0xff]
    %v83 = vld [vmem:[#allocation5 + $0xb8] sm:$0xff]
    %v84 = vld [vmem:[#allocation5 + $0xc0] sm:$0xff]
    %v85 = vld [vmem:[#allocation5 + $0xc8] sm:$0xff]
    %v86 = vld [vmem:[#allocation5 + $0xd0] sm:$0xff]
    %v87 = vld [vmem:[#allocation5 + $0xd8] sm:$0xff]
    %v88 = vld [vmem:[#allocation5 + $0xe0] sm:$0xff]
    %v89 = vld [vmem:[#allocation5 + $0xe8] sm:$0xff]
    %v90 = vld [vmem:[#allocation5 + $0xf0] sm:$0xff]
    %v91 = vld [vmem:[#allocation5 + $0xf8] sm:$0xff]
    %v92 = vld [vmem:[#allocation5 + $0x100] sm:$0xff]
    %v93 = vld [vmem:[#allocation5 + $0x108] sm:$0xff]
    %v94 = vld [vmem:[#allocation5 + $0x110] sm:$0xff]
    %v95 = vld [vmem:[#allocation5 + $0x118] sm:$0xff]
    %v96 = vld [vmem:[#allocation5 + $0x120] sm:$0xff]
    %v97 = vld [vmem:[#allocation5 + $0x128] sm:$0xff]
    %v98 = vld [vmem:[#allocation5 + $0x130] sm:$0xff]
    %v99 = vld [vmem:[#allocation5 + $0x138] sm:$0xff]
    %v100 = vld [vmem:[#allocation5 + $0x140] sm:$0xff]
    %v101 = vld [vmem:[#allocation5 + $0x148] sm:$0xff]
    %v102 = vld [vmem:[#allocation5 + $0x150] sm:$0xff]
    %v103 = vld [vmem:[#allocation5 + $0x158] sm:$0xff]
    %v104 = vld [vmem:[#allocation5 + $0x160] sm:$0xff]
    %v105 = vld [vmem:[#allocation5 + $0x168] sm:$0xff]
    %v106 = vld [vmem:[#allocation5 + $0x170] sm:$0xff]
    %v107 = vld [vmem:[#allocation5 + $0x178] sm:$0xff]
    %108 = vmatprep.subr.mxu0 %v106
    %109 = vmatpush1.msra.mxu0 %v105
    %110 = vmatprep.subr.mxu0 %v103
    %111 = vmatpush1.msra.mxu0 %v102
    %112 = vmatprep.subr.mxu0 %v100
    %113 = vmatpush1.msra.mxu0 %v99
    %114 = vmatprep.subr.mxu0 %v97
    %115 = vmatpush1.msra.mxu0 %v96
    %116 = vmatprep.subr.mxu0 %v94
    %117 = vmatpush1.msra.mxu0 %v93
    %118 = vmatprep.subr.mxu0 %v91
    %119 = vmatpush1.msra.mxu0 %v90
    %120 = vmatprep.subr.mxu0 %v88
    %121 = vmatpush1.msra.mxu0 %v87
    %122 = vmatprep.subr.mxu0 %v85
    %123 = vmatpush1.msra.mxu0 %v84
    %124 = vmatprep.subr.mxu0 %v82
    %125 = vmatpush1.msra.mxu0 %v81
    %126 = vmatprep.subr.mxu0 %v79
    %127 = vmatpush1.msra.mxu0 %v78
    %128 = vmatprep.subr.mxu0 %v76
    %129 = vmatpush1.msra.mxu0 %v75
    %130 = vmatprep.subr.mxu0 %v73
    %131 = vmatpush1.msra.mxu0 %v72
    %132 = vmatprep.subr.mxu0 %v70
    %133 = vmatpush1.msra.mxu0 %v69
    %134 = vmatprep.subr.mxu0 %v67
    %135 = vmatpush1.msra.mxu0 %v66
    %136 = vmatprep.subr.mxu0 %v64
    %137 = vmatpush1.msra.mxu0 %v63
    %138 = vmatprep.subr.mxu0 %v61
    %139 = vmatpush1.msra.mxu0 %v60
    %140 = vmatprep.subr.mxu0 0.0
    %141 = vmatpush2.msra.mxu0 0.0
    %142 = vmatprep.subr.mxu0 0.0
    %143 = vmatpush2.msra.mxu0 0.0
    %144 = vmatprep.subr.mxu0 0.0
    %145 = vmatpush2.msra.mxu0 0.0
    %146 = vmatprep.subr.mxu0 0.0
    %147 = vmatpush2.msra.mxu0 0.0
    %148 = vmatprep.subr.mxu0 0.0
    %149 = vmatpush2.msra.mxu0 0.0
    %150 = vmatprep.subr.mxu0 0.0
    %151 = vmatpush2.msra.mxu0 0.0
    %152 = vmatprep.subr.mxu0 0.0
    %153 = vmatpush2.msra.mxu0 0.0
    %154 = vmatprep.subr.mxu0 0.0
    %155 = vmatpush2.msra.mxu0 0.0
    %156 = vmatprep.subr.mxu0 0.0
    %157 = vmatpush2.msra.mxu0 0.0
    %158 = vmatprep.subr.mxu0 0.0
    %159 = vmatpush2.msra.mxu0 0.0
    %160 = vmatprep.subr.mxu0 0.0
    %161 = vmatpush2.msra.mxu0 0.0
    %162 = vmatprep.subr.mxu0 0.0
    %163 = vmatpush2.msra.mxu0 0.0
    %164 = vmatprep.subr.mxu0 0.0
    %165 = vmatpush2.msra.mxu0 0.0
    %166 = vmatprep.subr.mxu0 0.0
    %167 = vmatpush2.msra.mxu0 0.0
    %168 = vmatprep.subr.mxu0 0.0
    %169 = vmatpush2.msra.mxu0 0.0
    %170 = vmatprep.subr.mxu0 0.0
    %171 = vmatpush2.msra.mxu0 0.0
    %172 = vmatprep.mubr.f32.mxu0 0.0
    %173 = vmatmul.mubr.f32.gmra.mxu0 %v58
    %v174 = vpop.f32.mrf.mxu0
    %v175 = vadd.f32 0.0, %v174
    %v176 = vpop.f32.mrf.mxu0
    %v177 = vadd.f32 0.0, %v176
    %178 = vmatprep.mubr.f32.mxu0 0.0
    %179 = vmatmul.mubr.f32.gmra.mxu0 %v59
    %v180 = vpop.f32.mrf.mxu0
    %v181 = vadd.f32 0.0, %v180
    %v182 = vpop.f32.mrf.mxu0
    %v183 = vadd.f32 0.0, %v182
    %184 = vdwg.mxu0
    %185 = vmatprep.subr.mxu0 0.0
    %186 = vmatpush1.msra.mxu0 %v107
    %187 = vmatprep.subr.mxu0 0.0
    %188 = vmatpush1.msra.mxu0 %v104
    %189 = vmatprep.subr.mxu0 0.0
    %190 = vmatpush1.msra.mxu0 %v101
    %191 = vmatprep.subr.mxu0 0.0
    %192 = vmatpush1.msra.mxu0 %v98
    %193 = vmatprep.subr.mxu0 0.0
    %194 = vmatpush1.msra.mxu0 %v95
    %195 = vmatprep.subr.mxu0 0.0
    %196 = vmatpush1.msra.mxu0 %v92
    %197 = vmatprep.subr.mxu0 0.0
    %198 = vmatpush1.msra.mxu0 %v89
    %199 = vmatprep.subr.mxu0 0.0
    %200 = vmatpush1.msra.mxu0 %v86
    %201 = vmatprep.subr.mxu0 0.0
    %202 = vmatpush1.msra.mxu0 %v83
    %203 = vmatprep.subr.mxu0 0.0
    %204 = vmatpush1.msra.mxu0 %v80
    %205 = vmatprep.subr.mxu0 0.0
    %206 = vmatpush1.msra.mxu0 %v77
    %207 = vmatprep.subr.mxu0 0.0
    %208 = vmatpush1.msra.mxu0 %v74
    %209 = vmatprep.subr.mxu0 0.0
    %210 = vmatpush1.msra.mxu0 %v71
    %211 = vmatprep.subr.mxu0 0.0
    %212 = vmatpush1.msra.mxu0 %v68
    %213 = vmatprep.subr.mxu0 0.0
    %214 = vmatpush1.msra.mxu0 %v65
    %215 = vmatprep.subr.mxu0 0.0
    %216 = vmatpush1.msra.mxu0 %v62
    %217 = vmatprep.subr.mxu0 0.0
    %218 = vmatpush2.msra.mxu0 0.0
    %219 = vmatprep.subr.mxu0 0.0
    %220 = vmatpush2.msra.mxu0 0.0
    %221 = vmatprep.subr.mxu0 0.0
    %222 = vmatpush2.msra.mxu0 0.0
    %223 = vmatprep.subr.mxu0 0.0
    %224 = vmatpush2.msra.mxu0 0.0
    %225 = vmatprep.subr.mxu0 0.0
    %226 = vmatpush2.msra.mxu0 0.0
    %227 = vmatprep.subr.mxu0 0.0
    %228 = vmatpush2.msra.mxu0 0.0
    %229 = vmatprep.subr.mxu0 0.0
    %230 = vmatpush2.msra.mxu0 0.0
    %231 = vmatprep.subr.mxu0 0.0
    %232 = vmatpush2.msra.mxu0 0.0
    %233 = vmatprep.subr.mxu0 0.0
    %234 = vmatpush2.msra.mxu0 0.0
    %235 = vmatprep.subr.mxu0 0.0
    %236 = vmatpush2.msra.mxu0 0.0
    %237 = vmatprep.subr.mxu0 0.0
    %238 = vmatpush2.msra.mxu0 0.0
    %239 = vmatprep.subr.mxu0 0.0
    %240 = vmatpush2.msra.mxu0 0.0
    %241 = vmatprep.subr.mxu0 0.0
    %242 = vmatpush2.msra.mxu0 0.0
    %243 = vmatprep.subr.mxu0 0.0
    %244 = vmatpush2.msra.mxu0 0.0
    %245 = vmatprep.subr.mxu0 0.0
    %246 = vmatpush2.msra.mxu0 0.0
    %247 = vmatprep.subr.mxu0 0.0
    %248 = vmatpush2.msra.mxu0 0.0
    %249 = vmatprep.mubr.f32.mxu0 0.0
    %250 = vmatmul.mubr.f32.gmra.mxu0 %v58
    %v251 = vpop.f32.mrf.mxu0
    %v252 = vadd.f32 0.0, %v251
    %v253 = vpop.f32.mrf.mxu0
    %254 = vmatprep.mubr.f32.mxu0 0.0
    %255 = vmatmul.mubr.f32.gmra.mxu0 %v59
    %v256 = vpop.f32.mrf.mxu0
    %v257 = vadd.f32 0.0, %v256
    %v258 = vpop.f32.mrf.mxu0
    %259 = vdwg.mxu0
    %v260 = vadd.f32 %v52, %v175
    %v261 = vadd.f32 %v53, %v177
    %v262 = vadd.f32 %v54, %v252
    %v263 = vadd.f32 %v55, %v181
    %v264 = vadd.f32 %v56, %v183
    %v265 = vadd.f32 %v57, %v257
    %266 = vst [vmem:[#allocation2] sm:$0xff] %v260
    %267 = vst [vmem:[#allocation2 + $0x8] sm:$0xff] %v261
    %268 = vst [vmem:[#allocation2 + $0x10] sm:$0xff] %v262
    %269 = vst [vmem:[#allocation2 + $0x18] sm:$0xff] %v263
    %270 = vst [vmem:[#allocation2 + $0x20] sm:$0xff] %v264
    %271 = vst [vmem:[#allocation2 + $0x28] sm:$0xff] %v265
    // Predicated region
    $region26: #{opt_attention_forward.3} parent=1 // pred_check
      %p272 = pneg %p42
    $region27: #{opt_attention_forward.3} parent=1 // pred_check_branch
      %274 = sbr.rel (%p272) target = $region29
    $region28: #{opt_attention_forward.3} parent=1 // pred_region
      %v275 = vld [vmem:[#allocation2] sm:$0xff]
      %v276 = vld [vmem:[#allocation2 + $0x8] sm:$0xff]
      %v277 = vld [vmem:[#allocation2 + $0x10] sm:$0xff]
      %v278 = vld [vmem:[#allocation2 + $0x18] sm:$0xff]
      %v279 = vld [vmem:[#allocation2 + $0x20] sm:$0xff]
      %v280 = vld [vmem:[#allocation2 + $0x28] sm:$0xff]
      %v281 = vld [vmem:[%s2] sm:$0x7]
      %v283 = vlaneseq
      %v284 = vshrl.u32 %v283, 7
      %v285 = vsub.s32 0, %v284
      %v286 = vrot.slane %v281, %v285
      %v287 = vlaneseq
      %v288 = vshrl.u32 %v287, 7
      %v289 = vsub.s32 1, %v288
      %v290 = vrot.slane %v281, %v289
      %v291 = vlaneseq
      %v292 = vshrl.u32 %v291, 7
      %v293 = vsub.s32 2, %v292
      %v294 = vrot.slane %v281, %v293
      %v298 = vadd.f32 %v275, %v286
      %v299 = vadd.f32 %v276, %v290
      %v300 = vadd.f32 %v277, %v294
      %v301 = vadd.f32 %v278, %v286
      %v302 = vadd.f32 %v279, %v290
      %v303 = vadd.f32 %v280, %v294
      %304 = vst [vmem:[%s3] sm:$0xff] %v298
      %305 = vst [vmem:[%s3 + $0x8] sm:$0xff] %v299
      %306 = vst [vmem:[%s3 + $0x10] sm:$0xff] %v300
      %307 = vst [vmem:[%s3 + $0x18] sm:$0xff] %v301
      %308 = vst [vmem:[%s3 + $0x20] sm:$0xff] %v302
      %309 = vst [vmem:[%s3 + $0x28] sm:$0xff] %v303
    $region29: #{opt_attention_forward.3} parent=1 // pred_fallthru
      _
    // Predicated region
    $region30: #{opt_attention_forward.3} parent=1 // pred_check
      _
    $region31: #{opt_attention_forward.3} parent=1 // pred_check_branch
      %311 = sbr.rel (0) target = $region33
    $region32: #{opt_attention_forward.3} parent=1 // pred_region
      _
    $region33: #{opt_attention_forward.3} parent=1 // pred_fallthru
      _
    // Predicated region
    $region34: #{opt_attention_forward.3} parent=1 // pred_check
      _
    $region35: #{opt_attention_forward.3} parent=1 // pred_check_branch
      %313 = sbr.rel (0) target = $region37
    $region36: #{opt_attention_forward.3} parent=1 // pred_region
      _
    $region37: #{opt_attention_forward.3} parent=1 // pred_fallthru
      _
    %314 = vsyncpa [#allocation4], 1
    %315 = vsyncpa [#allocation6], 1

// kernel: opt_attention_forward.4
$region0: #{opt_attention_forward.4}
  #allocation0 [shape = 'u32[]', space=smem, size = 0x4, offset = 0x4, fixed_abs, tag = 'smem constant byte address 0x4 - core index']
  #allocation1 [shape = 'u32[144,128]{1,0:T(1,128)}', space=vmem, size = 0x12000, scoped, tag = 'internal scratch']
  #allocation2 [shape = 'f32[4,8,32]{2,1,0:T(8,128)}', space=vmem, size = 0x4000, scoped, tag = 'scratch operand']
  #allocation3 [shape = 'f32[4,8,1]{2,1,0:T(8,128)}', space=vmem, size = 0x4000, scoped, tag = 'scratch operand']
  #allocation4 [shape = 'f32[4,8,1]{2,1,0:T(8,128)}', space=vmem, size = 0x4000, scoped, tag = 'scratch operand']
  %s0 = inlined_call_operand.vmem [shape: f32[2,8,384], index: 0, kind: input, shape index: {}, may-alias: {0,1,2}]
  %s1 = inlined_call_operand.vmem [shape: f32[2,8,384], index: 1, kind: input, shape index: {}, may-alias: {0,1,2}]
  %s2 = inlined_call_operand.vmem [shape: f32[2,8,384], index: 2, kind: input, shape index: {}, may-alias: {0,1,2}]
  %s3 = inlined_call_operand.vmem [shape: f32[1,1,8,8], index: 3, kind: input, shape index: {}]
  %s4 = inlined_call_operand.vmem [shape: f32[2,8,128], index: 4, kind: output, shape index: {}]
  %s5 = sld [smem:[#allocation0]]
  $region49: #{opt_attention_forward.4} parent=0
    _
  %s7 = ssub.s32 1, %s5
  %s8 = scalar_select 0, %s7, %s5
  loop: start=0, step=1, limit=4
  $region2: #{opt_attention_forward.4} parent=0 // loop_pre_header
    _
  $region3: #{opt_attention_forward.4} parent=0 // loop_header
    %s10 = sphi 0, %s14
    %p11 = scmp.ge.s32.totalorder %s10, 4
    %s17 = sphi 0, %s36
    %s18 = sphi 0, %s32
    %s19 = sphi 0, %s28
    %s20 = sphi 0, %s17
    %s21 = sphi 0, %s18
    %s22 = sphi 0, %s19
    %s23 = sphi 0, %s20
    %s24 = sphi 0, %s21
    %s25 = sphi 0, %s22
    %s41 = sphi 0, %s43
    %s44 = sphi 0, %s41
    %s45 = sphi 0, %s44
    %s61 = sphi 0, %s45
    %s69 = sphi 0, %s71
    %s72 = sphi 0, %s69
    %s73 = sphi 0, %s72
    %s89 = sphi 0, %s73
    %s97 = sphi 0, %s99
    %s100 = sphi 0, %s97
    %s101 = sphi 0, %s100
    %s117 = sphi 0, %s101
    %s125 = sphi 0, %s127
    %s128 = sphi 0, %s125
    %s129 = sphi 0, %s128
    %s145 = sphi 0, %s129
    %s153 = sphi 0, %s155
    %s156 = sphi 0, %s153
    %s157 = sphi 0, %s156
    %s173 = sphi 0, %s157
  $region4: #{opt_attention_forward.4} parent=0 // loop_header_branch
    %13 = sbr.rel (%p11) target = $region8
  $region5: #{opt_attention_forward.4} parent=0 // loop_body
    %s15 = ssub.s32 %s10, 1
    %s16 = ssub.s32 %s10, 2
    %s26 = sadd.s32 1, %s19
    %p27 = scmp.ge.s32.totalorder %s26, 1
    %s28 = scalar_select %p27, 0, %s26
    %s29 = sadd.s32 1, %s18
    %s30 = scalar_select %p27, %s29, %s18
    %p31 = scmp.ge.s32.totalorder %s30, 1
    %s32 = scalar_select %p31, 0, %s30
    %s33 = sadd.s32 1, %s17
    %s34 = scalar_select %p31, %s33, %s17
    %p35 = scmp.ge.s32.totalorder %s34, 2
    %s36 = scalar_select %p35, 0, %s34
    %s37 = ssub.s32 %s17, %s36
    %s38 = ssub.s32 %s18, %s32
    %s39 = sor.u32 %s37, %s38
    %p40 = scmp.eq.s32.totalorder %s39, 0
    %s42 = sadd.s32 %s41, 1
    %s43 = scalar_select %p40, %s41, %s42
    %p46 = pneg %p40
    %p47 = scmp.eq.s32.totalorder %s10, 1
    %p48 = por %p46, %p47
    %p49 = scmp.ne.s32.totalorder %s41, %s44
    %p50 = scmp.eq.s32.totalorder %s10, 0
    %p51 = por %p49, %p50
    %p52 = scmp.ne.s32.totalorder %s41, %s44
    %p53 = scmp.eq.s32.totalorder %s15, 1
    %p54 = por %p52, %p53
    %p55 = scmp.ne.s32.totalorder %s44, %s45
    %p56 = scmp.eq.s32.totalorder %s15, 0
    %p57 = por %p55, %p56
    %p58 = scmp.ne.s32.totalorder %s44, %s45
    %p59 = scmp.eq.s32.totalorder %s16, 1
    %p60 = por %p58, %p59
    %p62 = scmp.ne.s32.totalorder %s45, %s61
    %p63 = scmp.eq.s32.totalorder %s16, 0
    %p64 = por %p62, %p63
    %s65 = ssub.s32 %s17, %s36
    %s66 = ssub.s32 %s19, %s28
    %s67 = sor.u32 %s65, %s66
    %p68 = scmp.eq.s32.totalorder %s67, 0
    %s70 = sadd.s32 %s69, 1
    %s71 = scalar_select %p68, %s69, %s70
    %p74 = pneg %p68
    %p75 = scmp.eq.s32.totalorder %s10, 1
    %p76 = por %p74, %p75
    %p77 = scmp.ne.s32.totalorder %s69, %s72
    %p78 = scmp.eq.s32.totalorder %s10, 0
    %p79 = por %p77, %p78
    %p80 = scmp.ne.s32.totalorder %s69, %s72
    %p81 = scmp.eq.s32.totalorder %s15, 1
    %p82 = por %p80, %p81
    %p83 = scmp.ne.s32.totalorder %s72, %s73
    %p84 = scmp.eq.s32.totalorder %s15, 0
    %p85 = por %p83, %p84
    %p86 = scmp.ne.s32.totalorder %s72, %s73
    %p87 = scmp.eq.s32.totalorder %s16, 1
    %p88 = por %p86, %p87
    %p90 = scmp.ne.s32.totalorder %s73, %s89
    %p91 = scmp.eq.s32.totalorder %s16, 0
    %p92 = por %p90, %p91
    %s93 = ssub.s32 %s17, %s36
    %s94 = ssub.s32 %s19, %s28
    %s95 = sor.u32 %s93, %s94
    %p96 = scmp.eq.s32.totalorder %s95, 0
    %s98 = sadd.s32 %s97, 1
    %s99 = scalar_select %p96, %s97, %s98
    %p102 = pneg %p96
    %p103 = scmp.eq.s32.totalorder %s10, 1
    %p104 = por %p102, %p103
    %p105 = scmp.ne.s32.totalorder %s97, %s100
    %p106 = scmp.eq.s32.totalorder %s10, 0
    %p107 = por %p105, %p106
    %p108 = scmp.ne.s32.totalorder %s97, %s100
    %p109 = scmp.eq.s32.totalorder %s15, 1
    %p110 = por %p108, %p109
    %p111 = scmp.ne.s32.totalorder %s100, %s101
    %p112 = scmp.eq.s32.totalorder %s15, 0
    %p113 = por %p111, %p112
    %p114 = scmp.ne.s32.totalorder %s100, %s101
    %p115 = scmp.eq.s32.totalorder %s16, 1
    %p116 = por %p114, %p115
    %p118 = scmp.ne.s32.totalorder %s101, %s117
    %p119 = scmp.eq.s32.totalorder %s16, 0
    %p120 = por %p118, %p119
    %s121 = ssub.s32 %s18, %s32
    %s122 = ssub.s32 %s19, %s28
    %s123 = sor.u32 %s121, %s122
    %p124 = scmp.eq.s32.totalorder %s123, 0
    %s126 = sadd.s32 %s125, 1
    %s127 = scalar_select %p124, %s125, %s126
    %p130 = pneg %p124
    %p131 = scmp.eq.s32.totalorder %s10, 1
    %p132 = por %p130, %p131
    %p133 = scmp.ne.s32.totalorder %s125, %s128
    %p134 = scmp.eq.s32.totalorder %s10, 0
    %p135 = por %p133, %p134
    %p136 = scmp.ne.s32.totalorder %s125, %s128
    %p137 = scmp.eq.s32.totalorder %s15, 1
    %p138 = por %p136, %p137
    %p139 = scmp.ne.s32.totalorder %s128, %s129
    %p140 = scmp.eq.s32.totalorder %s15, 0
    %p141 = por %p139, %p140
    %p142 = scmp.ne.s32.totalorder %s128, %s129
    %p143 = scmp.eq.s32.totalorder %s16, 1
    %p144 = por %p142, %p143
    %p146 = scmp.ne.s32.totalorder %s129, %s145
    %p147 = scmp.eq.s32.totalorder %s16, 0
    %p148 = por %p146, %p147
    %s149 = ssub.s32 %s17, %s36
    %s150 = ssub.s32 %s18, %s32
    %s151 = sor.u32 %s149, %s150
    %p152 = scmp.eq.s32.totalorder %s151, 0
    %s154 = sadd.s32 %s153, 1
    %s155 = scalar_select %p152, %s153, %s154
    %p158 = pneg %p152
    %p159 = scmp.eq.s32.totalorder %s10, 1
    %p160 = por %p158, %p159
    %p161 = scmp.ne.s32.totalorder %s153, %s156
    %p162 = scmp.eq.s32.totalorder %s10, 0
    %p163 = por %p161, %p162
    %p164 = scmp.ne.s32.totalorder %s153, %s156
    %p165 = scmp.eq.s32.totalorder %s15, 1
    %p166 = por %p164, %p165
    %p167 = scmp.ne.s32.totalorder %s156, %s157
    %p168 = scmp.eq.s32.totalorder %s15, 0
    %p169 = por %p167, %p168
    %p170 = scmp.ne.s32.totalorder %s156, %s157
    %p171 = scmp.eq.s32.totalorder %s16, 1
    %p172 = por %p170, %p171
    %p174 = scmp.ne.s32.totalorder %s157, %s173
    %p175 = scmp.eq.s32.totalorder %s16, 0
    %p176 = por %p174, %p175
    %p177 = scmp.le.s32.totalorder 1, %s10
    %p178 = scmp.lt.s32.totalorder %s10, 3
    %p179 = pnand %p177, %p178
    %p180 = pneg %p179
    // Predicated region
    $region9: #{opt_attention_forward.4} parent=5 // pred_check
      _
    $region10: #{opt_attention_forward.4} parent=5 // pred_check_branch
      %182 = sbr.rel (%p179) target = $region12
    $region11: #{opt_attention_forward.4} parent=5 // pred_region
      %s183 = ssub.s32 %s10, 1
      // Predicated region
      $region13: #{opt_attention_forward.4} parent=11 // pred_check
        %p184 = pneg %p141
      $region14: #{opt_attention_forward.4} parent=11 // pred_check_branch
        %186 = sbr.rel (%p184) target = $region16
      $region15: #{opt_attention_forward.4} parent=11 // pred_region
        %p187 = scmp.lt.s32.totalorder %s21, 0
        %s188 = scalar_select %p187, %s21, 0
        %p189 = scmp.lt.s32.totalorder %s22, 0
        %s190 = scalar_select %p189, %s22, 0
        %s191 = sadd.s32 %s190, %s188
        %s192 = smul.addr %s191, 8
        %s193 = scalar_lea.vmem %s3, %s192
      $region16: #{opt_attention_forward.4} parent=11 // pred_fallthru
        _
    $region12: #{opt_attention_forward.4} parent=5 // pred_fallthru
      _
    %p194 = scmp.lt.s32.totalorder %s10, 2
    // Predicated region
    $region17: #{opt_attention_forward.4} parent=5 // pred_check
      %p195 = pneg %p194
    $region18: #{opt_attention_forward.4} parent=5 // pred_check_branch
      %197 = sbr.rel (%p195) target = $region20
    $region19: #{opt_attention_forward.4} parent=5 // pred_region
      // Predicated region
      $region21: #{opt_attention_forward.4} parent=19 // pred_check
        %p198 = pneg %p51
      $region22: #{opt_attention_forward.4} parent=19 // pred_check_branch
        %200 = sbr.rel (%p198) target = $region24
      $region23: #{opt_attention_forward.4} parent=19 // pred_region
        %p201 = scmp.lt.s32.totalorder %s17, 1
        %s202 = scalar_select %p201, %s17, 1
        %p203 = scmp.lt.s32.totalorder %s18, 0
        %s204 = scalar_select %p203, %s18, 0
        %s205 = smul.addr %s204, 3
        %s206 = smul.addr %s202, 3
        %s207 = sadd.s32 %s205, %s206
        %s208 = smul.addr %s207, 8
        %s209 = scalar_lea.vmem %s0, %s208
      $region24: #{opt_attention_forward.4} parent=19 // pred_fallthru
        _
      // Predicated region
      $region25: #{opt_attention_forward.4} parent=19 // pred_check
        %p210 = pneg %p79
      $region26: #{opt_attention_forward.4} parent=19 // pred_check_branch
        %212 = sbr.rel (%p210) target = $region28
      $region27: #{opt_attention_forward.4} parent=19 // pred_region
        %p213 = scmp.lt.s32.totalorder %s17, 1
        %s214 = scalar_select %p213, %s17, 1
        %p215 = scmp.lt.s32.totalorder %s19, 0
        %s216 = scalar_select %p215, %s19, 0
        %s217 = smul.addr %s216, 3
        %s218 = sadd.s32 1, %s217
        %s219 = smul.addr %s214, 3
        %s220 = sadd.s32 %s218, %s219
        %s221 = smul.addr %s220, 8
        %s222 = scalar_lea.vmem %s1, %s221
      $region28: #{opt_attention_forward.4} parent=19 // pred_fallthru
        _
      // Predicated region
      $region29: #{opt_attention_forward.4} parent=19 // pred_check
        %p223 = pneg %p107
      $region30: #{opt_attention_forward.4} parent=19 // pred_check_branch
        %225 = sbr.rel (%p223) target = $region32
      $region31: #{opt_attention_forward.4} parent=19 // pred_region
        %p226 = scmp.lt.s32.totalorder %s17, 1
        %s227 = scalar_select %p226, %s17, 1
        %p228 = scmp.lt.s32.totalorder %s19, 0
        %s229 = scalar_select %p228, %s19, 0
        %s230 = smul.addr %s229, 3
        %s231 = sadd.s32 2, %s230
        %s232 = smul.addr %s227, 3
        %s233 = sadd.s32 %s231, %s232
        %s234 = smul.addr %s233, 8
        %s235 = scalar_lea.vmem %s2, %s234
      $region32: #{opt_attention_forward.4} parent=19 // pred_fallthru
        _
    $region20: #{opt_attention_forward.4} parent=5 // pred_fallthru
      _
    %p236 = scmp.le.s32.totalorder 1, %s10
    %p237 = scmp.lt.s32.totalorder %s10, 3
    %p238 = pnand %p236, %p237
    %p239 = pneg %p238
    // Predicated region
    $region33: #{opt_attention_forward.4} parent=5 // pred_check
      _
    $region34: #{opt_attention_forward.4} parent=5 // pred_check_branch
      %241 = sbr.rel (%p238) target = $region36
    $region35: #{opt_attention_forward.4} parent=5 // pred_region
      %s242 = ssub.s32 %s10, 1
      %p243 = scmp.lt.s32.totalorder %s20, 1
      %s244 = scalar_select %p243, %s20, 1
      %p245 = scmp.lt.s32.totalorder %s21, 0
      %s246 = scalar_select %p245, %s21, 0
      %s247 = smul.addr %s246, 3
      %s248 = smul.addr %s244, 3
      %s249 = sadd.s32 %s247, %s248
      %s250 = smul.addr %s249, 8
      %s251 = scalar_lea.vmem %s0, %s250
      %p252 = pneg %p57
      %p253 = pneg %p54
      %p254 = scmp.lt.s32.totalorder %s20, 1
      %s255 = scalar_select %p254, %s20, 1
      %p256 = scmp.lt.s32.totalorder %s22, 0
      %s257 = scalar_select %p256, %s22, 0
      %s258 = smul.addr %s257, 3
      %s259 = sadd.s32 1, %s258
      %s260 = smul.addr %s255, 3
      %s261 = sadd.s32 %s259, %s260
      %s262 = smul.addr %s261, 8
      %s263 = scalar_lea.vmem %s1, %s262
      %p264 = pneg %p85
      %p265 = pneg %p82
      %p266 = scmp.lt.s32.totalorder %s20, 1
      %s267 = scalar_select %p266, %s20, 1
      %p268 = scmp.lt.s32.totalorder %s22, 0
      %s269 = scalar_select %p268, %s22, 0
      %s270 = smul.addr %s269, 3
      %s271 = sadd.s32 2, %s270
      %s272 = smul.addr %s267, 3
      %s273 = sadd.s32 %s271, %s272
      %s274 = smul.addr %s273, 8
      %s275 = scalar_lea.vmem %s2, %s274
      %p276 = pneg %p113
      %p277 = pneg %p110
      %p278 = scmp.lt.s32.totalorder %s21, 0
      %s279 = scalar_select %p278, %s21, 0
      %p280 = scmp.lt.s32.totalorder %s22, 0
      %s281 = scalar_select %p280, %s22, 0
      %s282 = sadd.s32 %s281, %s279
      %s283 = smul.addr %s282, 8
      %s284 = scalar_lea.vmem %s3, %s283
      %p285 = pneg %p141
      %p286 = pneg %p138
      %p287 = pneg %p169
      %p288 = pneg %p166
      %p289 = scmp.lt.s32.totalorder %s20, 1
      %s290 = scalar_select %p289, %s20, 1
      %p291 = scmp.lt.s32.totalorder %s21, 0
      %s292 = scalar_select %p291, %s21, 0
      %s293 = sadd.s32 %s292, %s290
      %s294 = smul.addr %s293, 8
      %s295 = scalar_lea.vmem %s4, %s294
      %p296 = scmp.lt.s32.totalorder %s20, 1
      %s297 = scalar_select %p296, %s20, 1
      %p298 = scmp.lt.s32.totalorder %s21, 0
      %s299 = scalar_select %p298, %s21, 0
      %s300 = smul.addr %s299, 3
      %s301 = smul.addr %s297, 3
      %s302 = sadd.s32 %s300, %s301
      %s303 = smul.addr %s302, 8
      %s304 = scalar_lea.vmem %s0, %s303
      %p305 = scmp.lt.s32.totalorder %s20, 1
      %s306 = scalar_select %p305, %s20, 1
      %p307 = scmp.lt.s32.totalorder %s22, 0
      %s308 = scalar_select %p307, %s22, 0
      %s309 = smul.addr %s308, 3
      %s310 = sadd.s32 1, %s309
      %s311 = smul.addr %s306, 3
      %s312 = sadd.s32 %s310, %s311
      %s313 = smul.addr %s312, 8
      %s314 = scalar_lea.vmem %s1, %s313
      %p315 = scmp.lt.s32.totalorder %s20, 1
      %s316 = scalar_select %p315, %s20, 1
      %p317 = scmp.lt.s32.totalorder %s22, 0
      %s318 = scalar_select %p317, %s22, 0
      %s319 = smul.addr %s318, 3
      %s320 = sadd.s32 2, %s319
      %s321 = smul.addr %s316, 3
      %s322 = sadd.s32 %s320, %s321
      %s323 = smul.addr %s322, 8
      %s324 = scalar_lea.vmem %s2, %s323
      %p325 = scmp.lt.s32.totalorder %s21, 0
      %s326 = scalar_select %p325, %s21, 0
      %p327 = scmp.lt.s32.totalorder %s22, 0
      %s328 = scalar_select %p327, %s22, 0
      %s329 = sadd.s32 %s328, %s326
      %s330 = smul.addr %s329, 8
      %s331 = scalar_lea.vmem %s3, %s330
      %p332 = scmp.lt.s32.totalorder %s20, 1
      %s333 = scalar_select %p332, %s20, 1
      %p334 = scmp.lt.s32.totalorder %s21, 0
      %s335 = scalar_select %p334, %s21, 0
      %s336 = sadd.s32 %s335, %s333
      %s337 = smul.addr %s336, 8
      %s338 = scalar_lea.vmem %s4, %s337
      %v340 = vld [vmem:[%s304] sm:$0xff]
      %v341 = vld [vmem:[%s314] sm:$0xff]
      %v342 = vld [vmem:[%s324] sm:$0xff]
      %v343 = vld [vmem:[%s331] sm:$0xff]
      %vm344 = vcmask 261120
      %v346 = vsel %vm344, %v340, 0
      %v349 = vsel %vm344, %v341, 0
      %351 = vmatprep.subr.mxu0 0.0
      %352 = vmatpush1.xpose.msra.mxu0 0.0
      %353 = vmatprep.subr.mxu0 0.0
      %354 = vmatpush1.xpose.msra.mxu0 0.0
      %355 = vmatprep.subr.mxu0 0.0
      %356 = vmatpush1.xpose.msra.mxu0 0.0
      %357 = vmatprep.subr.mxu0 0.0
      %358 = vmatpush1.xpose.msra.mxu0 0.0
      %359 = vmatprep.subr.mxu0 0.0
      %360 = vmatpush1.xpose.msra.mxu0 0.0
      %361 = vmatprep.subr.mxu0 0.0
      %362 = vmatpush1.xpose.msra.mxu0 0.0
      %363 = vmatprep.subr.mxu0 0.0
      %364 = vmatpush1.xpose.msra.mxu0 0.0
      %365 = vmatprep.subr.mxu0 0.0
      %366 = vmatpush1.xpose.msra.mxu0 0.0
      %367 = vmatprep.subr.mxu0 0.0
      %368 = vmatpush1.xpose.msra.mxu0 0.0
      %369 = vmatprep.subr.mxu0 0.0
      %370 = vmatpush1.xpose.msra.mxu0 0.0
      %371 = vmatprep.subr.mxu0 0.0
      %372 = vmatpush1.xpose.msra.mxu0 0.0
      %373 = vmatprep.subr.mxu0 0.0
      %374 = vmatpush1.xpose.msra.mxu0 0.0
      %375 = vmatprep.subr.mxu0 0.0
      %376 = vmatpush1.xpose.msra.mxu0 0.0
      %377 = vmatprep.subr.mxu0 0.0
      %378 = vmatpush1.xpose.msra.mxu0 0.0
      %379 = vmatprep.subr.mxu0 0.0
      %380 = vmatpush1.xpose.msra.mxu0 0.0
      %381 = vmatprep.subr.mxu0 0.0
      %382 = vmatpush1.xpose.msra.mxu0 %v349
      %383 = vmatprep.subr.mxu0 0.0
      %384 = vmatpush2.xpose.msra.mxu0 0.0
      %385 = vmatprep.subr.mxu0 0.0
      %386 = vmatpush2.xpose.msra.mxu0 0.0
      %387 = vmatprep.subr.mxu0 0.0
      %388 = vmatpush2.xpose.msra.mxu0 0.0
      %389 = vmatprep.subr.mxu0 0.0
      %390 = vmatpush2.xpose.msra.mxu0 0.0
      %391 = vmatprep.subr.mxu0 0.0
      %392 = vmatpush2.xpose.msra.mxu0 0.0
      %393 = vmatprep.subr.mxu0 0.0
      %394 = vmatpush2.xpose.msra.mxu0 0.0
      %395 = vmatprep.subr.mxu0 0.0
      %396 = vmatpush2.xpose.msra.mxu0 0.0
      %397 = vmatprep.subr.mxu0 0.0
      %398 = vmatpush2.xpose.msra.mxu0 0.0
      %399 = vmatprep.subr.mxu0 0.0
      %400 = vmatpush2.xpose.msra.mxu0 0.0
      %401 = vmatprep.subr.mxu0 0.0
      %402 = vmatpush2.xpose.msra.mxu0 0.0
      %403 = vmatprep.subr.mxu0 0.0
      %404 = vmatpush2.xpose.msra.mxu0 0.0
      %405 = vmatprep.subr.mxu0 0.0
      %406 = vmatpush2.xpose.msra.mxu0 0.0
      %407 = vmatprep.subr.mxu0 0.0
      %408 = vmatpush2.xpose.msra.mxu0 0.0
      %409 = vmatprep.subr.mxu0 0.0
      %410 = vmatpush2.xpose.msra.mxu0 0.0
      %411 = vmatprep.subr.mxu0 0.0
      %412 = vmatpush2.xpose.msra.mxu0 0.0
      %413 = vmatprep.subr.mxu0 0.0
      %414 = vmatpush2.xpose.msra.mxu0 0.0
      %415 = vmatprep.mubr.f32.mxu0 0.0
      %416 = vmatmul.mubr.f32.gmra.mxu0 %v346
      %v417 = vpop.f32.mrf.mxu0
      %v418 = vadd.f32 %v343, %v417
      %v419 = vpop.f32.mrf.mxu0
      %420 = vdwg.mxu0
      %v421 = vmax.f32 %v418, -3.4028235e+38
      %vm422 = vcmask 64512
      %v423 = vsel %vm422, %v421, -inf
      %424 = vmax.xlane.f32.xlu0 %v423
      %v425 = vpop.xlane.xlu0 %424
      %v426 = vsub.f32 %v421, %v425
      %v427 = vmul.f32 %v426, 1.442695
      %v428 = vpow.pop %v427
      %v429 = vsel %vm422, %v428, 0.0
      %430 = vadd.xlane.f32.xlu0 %v429
      %v431 = vpop.xlane.xlu0 %430
      %v432 = vpack.c.bf16 %v428, %v428
      %v433 = vpack.c.bf16 %v342, %v342
      %v435 = vsel %vm422, %v432, 0
      %vm437 = vcmask 1043456
      %v439 = vsel %vm437, %v433, 0
      %441 = vmatprep.subr.bf16.mxu0 0
      %442 = vmatpush1.bf16.msra.mxu0 0
      %443 = vmatprep.subr.bf16.mxu0 0
      %444 = vmatpush1.bf16.msra.mxu0 0
      %445 = vmatprep.subr.bf16.mxu0 0
      %446 = vmatpush1.bf16.msra.mxu0 0
      %447 = vmatprep.subr.bf16.mxu0 0
      %448 = vmatpush1.bf16.msra.mxu0 0
      %449 = vmatprep.subr.bf16.mxu0 0
      %450 = vmatpush1.bf16.msra.mxu0 0
      %451 = vmatprep.subr.bf16.mxu0 0
      %452 = vmatpush1.bf16.msra.mxu0 0
      %453 = vmatprep.subr.bf16.mxu0 0
      %454 = vmatpush1.bf16.msra.mxu0 0
      %455 = vmatprep.subr.bf16.mxu0 0
      %456 = vmatpush1.bf16.msra.mxu0 %v439
      %457 = vmatprep.subr.bf16.mxu0 0
      %458 = vmatpush2.bf16.msra.mxu0 0
      %459 = vmatprep.subr.bf16.mxu0 0
      %460 = vmatpush2.bf16.msra.mxu0 0
      %461 = vmatprep.subr.bf16.mxu0 0
      %462 = vmatpush2.bf16.msra.mxu0 0
      %463 = vmatprep.subr.bf16.mxu0 0
      %464 = vmatpush2.bf16.msra.mxu0 0
      %465 = vmatprep.subr.bf16.mxu0 0
      %466 = vmatpush2.bf16.msra.mxu0 0
      %467 = vmatprep.subr.bf16.mxu0 0
      %468 = vmatpush2.bf16.msra.mxu0 0
      %469 = vmatprep.subr.bf16.mxu0 0
      %470 = vmatpush2.bf16.msra.mxu0 0
      %471 = vmatprep.subr.bf16.mxu0 0
      %472 = vmatpush2.bf16.msra.mxu0 0
      %473 = vmatprep.mubr.bf16.mxu0 0
      %474 = vmatmul.mubr.bf16.gmra.mxu0 %v435
      %v475 = vpop.f32.mrf.mxu0
      %v476 = vadd.f32 0.0, %v475
      %v477 = vpop.f32.mrf.mxu0
      %v478 = vpop.f32.mrf.mxu0
      %v479 = vpop.f32.mrf.mxu0
      %480 = vdwg.mxu0
      %v481 = vrcp.pop %v431
      %v482 = vmul.f32 %v476, %v481
      %483 = vrot.lane.b32.xlu0 %v340, 96
      %v484 = vpop.permute.xlu0 %483
      %485 = vrot.lane.b32.xlu0 %v341, 96
      %v486 = vpop.permute.xlu0 %485
      %v487 = vsel %vm344, %v484, 0
      %v489 = vsel %vm344, %v486, 0
      %491 = vmatprep.subr.mxu0 0.0
      %492 = vmatpush1.xpose.msra.mxu0 0.0
      %493 = vmatprep.subr.mxu0 0.0
      %494 = vmatpush1.xpose.msra.mxu0 0.0
      %495 = vmatprep.subr.mxu0 0.0
      %496 = vmatpush1.xpose.msra.mxu0 0.0
      %497 = vmatprep.subr.mxu0 0.0
      %498 = vmatpush1.xpose.msra.mxu0 0.0
      %499 = vmatprep.subr.mxu0 0.0
      %500 = vmatpush1.xpose.msra.mxu0 0.0
      %501 = vmatprep.subr.mxu0 0.0
      %502 = vmatpush1.xpose.msra.mxu0 0.0
      %503 = vmatprep.subr.mxu0 0.0
      %504 = vmatpush1.xpose.msra.mxu0 0.0
      %505 = vmatprep.subr.mxu0 0.0
      %506 = vmatpush1.xpose.msra.mxu0 0.0
      %507 = vmatprep.subr.mxu0 0.0
      %508 = vmatpush1.xpose.msra.mxu0 0.0
      %509 = vmatprep.subr.mxu0 0.0
      %510 = vmatpush1.xpose.msra.mxu0 0.0
      %511 = vmatprep.subr.mxu0 0.0
      %512 = vmatpush1.xpose.msra.mxu0 0.0
      %513 = vmatprep.subr.mxu0 0.0
      %514 = vmatpush1.xpose.msra.mxu0 0.0
      %515 = vmatprep.subr.mxu0 0.0
      %516 = vmatpush1.xpose.msra.mxu0 0.0
      %517 = vmatprep.subr.mxu0 0.0
      %518 = vmatpush1.xpose.msra.mxu0 0.0
      %519 = vmatprep.subr.mxu0 0.0
      %520 = vmatpush1.xpose.msra.mxu0 0.0
      %521 = vmatprep.subr.mxu0 0.0
      %522 = vmatpush1.xpose.msra.mxu0 %v489
      %523 = vmatprep.subr.mxu0 0.0
      %524 = vmatpush2.xpose.msra.mxu0 0.0
      %525 = vmatprep.subr.mxu0 0.0
      %526 = vmatpush2.xpose.msra.mxu0 0.0
      %527 = vmatprep.subr.mxu0 0.0
      %528 = vmatpush2.xpose.msra.mxu0 0.0
      %529 = vmatprep.subr.mxu0 0.0
      %530 = vmatpush2.xpose.msra.mxu0 0.0
      %531 = vmatprep.subr.mxu0 0.0
      %532 = vmatpush2.xpose.msra.mxu0 0.0
      %533 = vmatprep.subr.mxu0 0.0
      %534 = vmatpush2.xpose.msra.mxu0 0.0
      %535 = vmatprep.subr.mxu0 0.0
      %536 = vmatpush2.xpose.msra.mxu0 0.0
      %537 = vmatprep.subr.mxu0 0.0
      %538 = vmatpush2.xpose.msra.mxu0 0.0
      %539 = vmatprep.subr.mxu0 0.0
      %540 = vmatpush2.xpose.msra.mxu0 0.0
      %541 = vmatprep.subr.mxu0 0.0
      %542 = vmatpush2.xpose.msra.mxu0 0.0
      %543 = vmatprep.subr.mxu0 0.0
      %544 = vmatpush2.xpose.msra.mxu0 0.0
      %545 = vmatprep.subr.mxu0 0.0
      %546 = vmatpush2.xpose.msra.mxu0 0.0
      %547 = vmatprep.subr.mxu0 0.0
      %548 = vmatpush2.xpose.msra.mxu0 0.0
      %549 = vmatprep.subr.mxu0 0.0
      %550 = vmatpush2.xpose.msra.mxu0 0.0
      %551 = vmatprep.subr.mxu0 0.0
      %552 = vmatpush2.xpose.msra.mxu0 0.0
      %553 = vmatprep.subr.mxu0 0.0
      %554 = vmatpush2.xpose.msra.mxu0 0.0
      %555 = vmatprep.mubr.f32.mxu0 0.0
      %556 = vmatmul.mubr.f32.gmra.mxu0 %v487
      %v557 = vpop.f32.mrf.mxu0
      %v558 = vadd.f32 %v343, %v557
      %v559 = vpop.f32.mrf.mxu0
      %560 = vdwg.mxu0
      %v561 = vmax.f32 %v558, -3.4028235e+38
      %v562 = vsel %vm422, %v561, -inf
      %563 = vmax.xlane.f32.xlu0 %v562
      %v564 = vpop.xlane.xlu0 %563
      %v565 = vsub.f32 %v561, %v564
      %v566 = vmul.f32 %v565, 1.442695
      %v567 = vpow.pop %v566
      %v568 = vsel %vm422, %v567, 0.0
      %569 = vadd.xlane.f32.xlu0 %v568
      %v570 = vpop.xlane.xlu0 %569
      %v571 = vpack.c.bf16 %v567, %v567
      %573 = vrot.lane.b32.xlu0 %v433, 96
      %v574 = vpop.permute.xlu0 %573
      %v576 = vsel %vm422, %v571, 0
      %v579 = vsel %vm437, %v574, 0
      %581 = vmatprep.subr.bf16.mxu0 0
      %582 = vmatpush1.bf16.msra.mxu0 0
      %583 = vmatprep.subr.bf16.mxu0 0
      %584 = vmatpush1.bf16.msra.mxu0 0
      %585 = vmatprep.subr.bf16.mxu0 0
      %586 = vmatpush1.bf16.msra.mxu0 0
      %587 = vmatprep.subr.bf16.mxu0 0
      %588 = vmatpush1.bf16.msra.mxu0 0
      %589 = vmatprep.subr.bf16.mxu0 0
      %590 = vmatpush1.bf16.msra.mxu0 0
      %591 = vmatprep.subr.bf16.mxu0 0
      %592 = vmatpush1.bf16.msra.mxu0 0
      %593 = vmatprep.subr.bf16.mxu0 0
      %594 = vmatpush1.bf16.msra.mxu0 0
      %595 = vmatprep.subr.bf16.mxu0 0
      %596 = vmatpush1.bf16.msra.mxu0 %v579
      %597 = vmatprep.subr.bf16.mxu0 0
      %598 = vmatpush2.bf16.msra.mxu0 0
      %599 = vmatprep.subr.bf16.mxu0 0
      %600 = vmatpush2.bf16.msra.mxu0 0
      %601 = vmatprep.subr.bf16.mxu0 0
      %602 = vmatpush2.bf16.msra.mxu0 0
      %603 = vmatprep.subr.bf16.mxu0 0
      %604 = vmatpush2.bf16.msra.mxu0 0
      %605 = vmatprep.subr.bf16.mxu0 0
      %606 = vmatpush2.bf16.msra.mxu0 0
      %607 = vmatprep.subr.bf16.mxu0 0
      %608 = vmatpush2.bf16.msra.mxu0 0
      %609 = vmatprep.subr.bf16.mxu0 0
      %610 = vmatpush2.bf16.msra.mxu0 0
      %611 = vmatprep.subr.bf16.mxu0 0
      %612 = vmatpush2.bf16.msra.mxu0 0
      %613 = vmatprep.mubr.bf16.mxu0 0
      %614 = vmatmul.mubr.bf16.gmra.mxu0 %v576
      %v615 = vpop.f32.mrf.mxu0
      %v616 = vadd.f32 0.0, %v615
      %v617 = vpop.f32.mrf.mxu0
      %v618 = vpop.f32.mrf.mxu0
      %v619 = vpop.f32.mrf.mxu0
      %620 = vdwg.mxu0
      %v621 = vrcp.pop %v570
      %v622 = vmul.f32 %v616, %v621
      %623 = vrot.lane.b32.xlu0 %v340, 64
      %v624 = vpop.permute.xlu0 %623
      %625 = vrot.lane.b32.xlu0 %v341, 64
      %v626 = vpop.permute.xlu0 %625
      %v627 = vsel %vm344, %v624, 0
      %v629 = vsel %vm344, %v626, 0
      %631 = vmatprep.subr.mxu0 0.0
      %632 = vmatpush1.xpose.msra.mxu0 0.0
      %633 = vmatprep.subr.mxu0 0.0
      %634 = vmatpush1.xpose.msra.mxu0 0.0
      %635 = vmatprep.subr.mxu0 0.0
      %636 = vmatpush1.xpose.msra.mxu0 0.0
      %637 = vmatprep.subr.mxu0 0.0
      %638 = vmatpush1.xpose.msra.mxu0 0.0
      %639 = vmatprep.subr.mxu0 0.0
      %640 = vmatpush1.xpose.msra.mxu0 0.0
      %641 = vmatprep.subr.mxu0 0.0
      %642 = vmatpush1.xpose.msra.mxu0 0.0
      %643 = vmatprep.subr.mxu0 0.0
      %644 = vmatpush1.xpose.msra.mxu0 0.0
      %645 = vmatprep.subr.mxu0 0.0
      %646 = vmatpush1.xpose.msra.mxu0 0.0
      %647 = vmatprep.subr.mxu0 0.0
      %648 = vmatpush1.xpose.msra.mxu0 0.0
      %649 = vmatprep.subr.mxu0 0.0
      %650 = vmatpush1.xpose.msra.mxu0 0.0
      %651 = vmatprep.subr.mxu0 0.0
      %652 = vmatpush1.xpose.msra.mxu0 0.0
      %653 = vmatprep.subr.mxu0 0.0
      %654 = vmatpush1.xpose.msra.mxu0 0.0
      %655 = vmatprep.subr.mxu0 0.0
      %656 = vmatpush1.xpose.msra.mxu0 0.0
      %657 = vmatprep.subr.mxu0 0.0
      %658 = vmatpush1.xpose.msra.mxu0 0.0
      %659 = vmatprep.subr.mxu0 0.0
      %660 = vmatpush1.xpose.msra.mxu0 0.0
      %661 = vmatprep.subr.mxu0 0.0
      %662 = vmatpush1.xpose.msra.mxu0 %v629
      %663 = vmatprep.subr.mxu0 0.0
      %664 = vmatpush2.xpose.msra.mxu0 0.0
      %665 = vmatprep.subr.mxu0 0.0
      %666 = vmatpush2.xpose.msra.mxu0 0.0
      %667 = vmatprep.subr.mxu0 0.0
      %668 = vmatpush2.xpose.msra.mxu0 0.0
      %669 = vmatprep.subr.mxu0 0.0
      %670 = vmatpush2.xpose.msra.mxu0 0.0
      %671 = vmatprep.subr.mxu0 0.0
      %672 = vmatpush2.xpose.msra.mxu0 0.0
      %673 = vmatprep.subr.mxu0 0.0
      %674 = vmatpush2.xpose.msra.mxu0 0.0
      %675 = vmatprep.subr.mxu0 0.0
      %676 = vmatpush2.xpose.msra.mxu0 0.0
      %677 = vmatprep.subr.mxu0 0.0
      %678 = vmatpush2.xpose.msra.mxu0 0.0
      %679 = vmatprep.subr.mxu0 0.0
      %680 = vmatpush2.xpose.msra.mxu0 0.0
      %681 = vmatprep.subr.mxu0 0.0
      %682 = vmatpush2.xpose.msra.mxu0 0.0
      %683 = vmatprep.subr.mxu0 0.0
      %684 = vmatpush2.xpose.msra.mxu0 0.0
      %685 = vmatprep.subr.mxu0 0.0
      %686 = vmatpush2.xpose.msra.mxu0 0.0
      %687 = vmatprep.subr.mxu0 0.0
      %688 = vmatpush2.xpose.msra.mxu0 0.0
      %689 = vmatprep.subr.mxu0 0.0
      %690 = vmatpush2.xpose.msra.mxu0 0.0
      %691 = vmatprep.subr.mxu0 0.0
      %692 = vmatpush2.xpose.msra.mxu0 0.0
      %693 = vmatprep.subr.mxu0 0.0
      %694 = vmatpush2.xpose.msra.mxu0 0.0
      %695 = vmatprep.mubr.f32.mxu0 0.0
      %696 = vmatmul.mubr.f32.gmra.mxu0 %v627
      %v697 = vpop.f32.mrf.mxu0
      %v698 = vadd.f32 %v343, %v697
      %v699 = vpop.f32.mrf.mxu0
      %700 = vdwg.mxu0
      %v701 = vmax.f32 %v698, -3.4028235e+38
      %v702 = vsel %vm422, %v701, -inf
      %703 = vmax.xlane.f32.xlu0 %v702
      %v704 = vpop.xlane.xlu0 %703
      %v705 = vsub.f32 %v701, %v704
      %v706 = vmul.f32 %v705, 1.442695
      %v707 = vpow.pop %v706
      %v708 = vsel %vm422, %v707, 0.0
      %709 = vadd.xlane.f32.xlu0 %v708
      %v710 = vpop.xlane.xlu0 %709
      %v711 = vpack.c.bf16 %v707, %v707
      %712 = vrot.lane.b32.xlu0 %v433, 64
      %v713 = vpop.permute.xlu0 %712
      %v715 = vsel %vm422, %v711, 0
      %v718 = vsel %vm437, %v713, 0
      %720 = vmatprep.subr.bf16.mxu0 0
      %721 = vmatpush1.bf16.msra.mxu0 0
      %722 = vmatprep.subr.bf16.mxu0 0
      %723 = vmatpush1.bf16.msra.mxu0 0
      %724 = vmatprep.subr.bf16.mxu0 0
      %725 = vmatpush1.bf16.msra.mxu0 0
      %726 = vmatprep.subr.bf16.mxu0 0
      %727 = vmatpush1.bf16.msra.mxu0 0
      %728 = vmatprep.subr.bf16.mxu0 0
      %729 = vmatpush1.bf16.msra.mxu0 0
      %730 = vmatprep.subr.bf16.mxu0 0
      %731 = vmatpush1.bf16.msra.mxu0 0
      %732 = vmatprep.subr.bf16.mxu0 0
      %733 = vmatpush1.bf16.msra.mxu0 0
      %734 = vmatprep.subr.bf16.mxu0 0
      %735 = vmatpush1.bf16.msra.mxu0 %v718
      %736 = vmatprep.subr.bf16.mxu0 0
      %737 = vmatpush2.bf16.msra.mxu0 0
      %738 = vmatprep.subr.bf16.mxu0 0
      %739 = vmatpush2.bf16.msra.mxu0 0
      %740 = vmatprep.subr.bf16.mxu0 0
      %741 = vmatpush2.bf16.msra.mxu0 0
      %742 = vmatprep.subr.bf16.mxu0 0
      %743 = vmatpush2.bf16.msra.mxu0 0
      %744 = vmatprep.subr.bf16.mxu0 0
      %745 = vmatpush2.bf16.msra.mxu0 0
      %746 = vmatprep.subr.bf16.mxu0 0
      %747 = vmatpush2.bf16.msra.mxu0 0
      %748 = vmatprep.subr.bf16.mxu0 0
      %749 = vmatpush2.bf16.msra.mxu0 0
      %750 = vmatprep.subr.bf16.mxu0 0
      %751 = vmatpush2.bf16.msra.mxu0 0
      %752 = vmatprep.mubr.bf16.mxu0 0
      %753 = vmatmul.mubr.bf16.gmra.mxu0 %v715
      %v754 = vpop.f32.mrf.mxu0
      %v755 = vadd.f32 0.0, %v754
      %v756 = vpop.f32.mrf.mxu0
      %v757 = vpop.f32.mrf.mxu0
      %v758 = vpop.f32.mrf.mxu0
      %759 = vdwg.mxu0
      %v760 = vrcp.pop %v710
      %v761 = vmul.f32 %v755, %v760
      %762 = vrot.lane.b32.xlu0 %v340, 32
      %v763 = vpop.permute.xlu0 %762
      %764 = vrot.lane.b32.xlu0 %v341, 32
      %v765 = vpop.permute.xlu0 %764
      %v766 = vsel %vm344, %v763, 0
      %v768 = vsel %vm344, %v765, 0
      %770 = vmatprep.subr.mxu0 0.0
      %771 = vmatpush1.xpose.msra.mxu0 0.0
      %772 = vmatprep.subr.mxu0 0.0
      %773 = vmatpush1.xpose.msra.mxu0 0.0
      %774 = vmatprep.subr.mxu0 0.0
      %775 = vmatpush1.xpose.msra.mxu0 0.0
      %776 = vmatprep.subr.mxu0 0.0
      %777 = vmatpush1.xpose.msra.mxu0 0.0
      %778 = vmatprep.subr.mxu0 0.0
      %779 = vmatpush1.xpose.msra.mxu0 0.0
      %780 = vmatprep.subr.mxu0 0.0
      %781 = vmatpush1.xpose.msra.mxu0 0.0
      %782 = vmatprep.subr.mxu0 0.0
      %783 = vmatpush1.xpose.msra.mxu0 0.0
      %784 = vmatprep.subr.mxu0 0.0
      %785 = vmatpush1.xpose.msra.mxu0 0.0
      %786 = vmatprep.subr.mxu0 0.0
      %787 = vmatpush1.xpose.msra.mxu0 0.0
      %788 = vmatprep.subr.mxu0 0.0
      %789 = vmatpush1.xpose.msra.mxu0 0.0
      %790 = vmatprep.subr.mxu0 0.0
      %791 = vmatpush1.xpose.msra.mxu0 0.0
      %792 = vmatprep.subr.mxu0 0.0
      %793 = vmatpush1.xpose.msra.mxu0 0.0
      %794 = vmatprep.subr.mxu0 0.0
      %795 = vmatpush1.xpose.msra.mxu0 0.0
      %796 = vmatprep.subr.mxu0 0.0
      %797 = vmatpush1.xpose.msra.mxu0 0.0
      %798 = vmatprep.subr.mxu0 0.0
      %799 = vmatpush1.xpose.msra.mxu0 0.0
      %800 = vmatprep.subr.mxu0 0.0
      %801 = vmatpush1.xpose.msra.mxu0 %v768
      %802 = vmatprep.subr.mxu0 0.0
      %803 = vmatpush2.xpose.msra.mxu0 0.0
      %804 = vmatprep.subr.mxu0 0.0
      %805 = vmatpush2.xpose.msra.mxu0 0.0
      %806 = vmatprep.subr.mxu0 0.0
      %807 = vmatpush2.xpose.msra.mxu0 0.0
      %808 = vmatprep.subr.mxu0 0.0
      %809 = vmatpush2.xpose.msra.mxu0 0.0
      %810 = vmatprep.subr.mxu0 0.0
      %811 = vmatpush2.xpose.msra.mxu0 0.0
      %812 = vmatprep.subr.mxu0 0.0
      %813 = vmatpush2.xpose.msra.mxu0 0.0
      %814 = vmatprep.subr.mxu0 0.0
      %815 = vmatpush2.xpose.msra.mxu0 0.0
      %816 = vmatprep.subr.mxu0 0.0
      %817 = vmatpush2.xpose.msra.mxu0 0.0
      %818 = vmatprep.subr.mxu0 0.0
      %819 = vmatpush2.xpose.msra.mxu0 0.0
      %820 = vmatprep.subr.mxu0 0.0
      %821 = vmatpush2.xpose.msra.mxu0 0.0
      %822 = vmatprep.subr.mxu0 0.0
      %823 = vmatpush2.xpose.msra.mxu0 0.0
      %824 = vmatprep.subr.mxu0 0.0
      %825 = vmatpush2.xpose.msra.mxu0 0.0
      %826 = vmatprep.subr.mxu0 0.0
      %827 = vmatpush2.xpose.msra.mxu0 0.0
      %828 = vmatprep.subr.mxu0 0.0
      %829 = vmatpush2.xpose.msra.mxu0 0.0
      %830 = vmatprep.subr.mxu0 0.0
      %831 = vmatpush2.xpose.msra.mxu0 0.0
      %832 = vmatprep.subr.mxu0 0.0
      %833 = vmatpush2.xpose.msra.mxu0 0.0
      %834 = vmatprep.mubr.f32.mxu0 0.0
      %835 = vmatmul.mubr.f32.gmra.mxu0 %v766
      %v836 = vpop.f32.mrf.mxu0
      %v837 = vadd.f32 %v343, %v836
      %v838 = vpop.f32.mrf.mxu0
      %839 = vdwg.mxu0
      %v840 = vmax.f32 %v837, -3.4028235e+38
      %v841 = vsel %vm422, %v840, -inf
      %842 = vmax.xlane.f32.xlu0 %v841
      %v843 = vpop.xlane.xlu0 %842
      %v844 = vsub.f32 %v840, %v843
      %v845 = vmul.f32 %v844, 1.442695
      %v846 = vpow.pop %v845
      %v847 = vsel %vm422, %v846, 0.0
      %848 = vadd.xlane.f32.xlu0 %v847
      %v849 = vpop.xlane.xlu0 %848
      %v850 = vpack.c.bf16 %v846, %v846
      %851 = vrot.lane.b32.xlu0 %v433, 32
      %v852 = vpop.permute.xlu0 %851
      %v854 = vsel %vm422, %v850, 0
      %v857 = vsel %vm437, %v852, 0
      %859 = vmatprep.subr.bf16.mxu0 0
      %860 = vmatpush1.bf16.msra.mxu0 0
      %861 = vmatprep.subr.bf16.mxu0 0
      %862 = vmatpush1.bf16.msra.mxu0 0
      %863 = vmatprep.subr.bf16.mxu0 0
      %864 = vmatpush1.bf16.msra.mxu0 0
      %865 = vmatprep.subr.bf16.mxu0 0
      %866 = vmatpush1.bf16.msra.mxu0 0
      %867 = vmatprep.subr.bf16.mxu0 0
      %868 = vmatpush1.bf16.msra.mxu0 0
      %869 = vmatprep.subr.bf16.mxu0 0
      %870 = vmatpush1.bf16.msra.mxu0 0
      %871 = vmatprep.subr.bf16.mxu0 0
      %872 = vmatpush1.bf16.msra.mxu0 0
      %873 = vmatprep.subr.bf16.mxu0 0
      %874 = vmatpush1.bf16.msra.mxu0 %v857
      %875 = vmatprep.subr.bf16.mxu0 0
      %876 = vmatpush2.bf16.msra.mxu0 0
      %877 = vmatprep.subr.bf16.mxu0 0
      %878 = vmatpush2.bf16.msra.mxu0 0
      %879 = vmatprep.subr.bf16.mxu0 0
      %880 = vmatpush2.bf16.msra.mxu0 0
      %881 = vmatprep.subr.bf16.mxu0 0
      %882 = vmatpush2.bf16.msra.mxu0 0
      %883 = vmatprep.subr.bf16.mxu0 0
      %884 = vmatpush2.bf16.msra.mxu0 0
      %885 = vmatprep.subr.bf16.mxu0 0
      %886 = vmatpush2.bf16.msra.mxu0 0
      %887 = vmatprep.subr.bf16.mxu0 0
      %888 = vmatpush2.bf16.msra.mxu0 0
      %889 = vmatprep.subr.bf16.mxu0 0
      %890 = vmatpush2.bf16.msra.mxu0 0
      %891 = vmatprep.mubr.bf16.mxu0 0
      %892 = vmatmul.mubr.bf16.gmra.mxu0 %v854
      %v893 = vpop.f32.mrf.mxu0
      %v894 = vadd.f32 0.0, %v893
      %v895 = vpop.f32.mrf.mxu0
      %v896 = vpop.f32.mrf.mxu0
      %v897 = vpop.f32.mrf.mxu0
      %898 = vdwg.mxu0
      %v899 = vrcp.pop %v849
      %v900 = vmul.f32 %v894, %v899
      %902 = vrot.lane.b32.xlu0 %v622, 32
      %v903 = vpop.permute.xlu0 %902
      %906 = vrot.lane.b32.xlu0 %v761, 64
      %v907 = vpop.permute.xlu0 %906
      %910 = vrot.lane.b32.xlu0 %v900, 96
      %v911 = vpop.permute.xlu0 %910
      %v913 = vsel %vm344, %v482, %v903
      %vm914 = vcmask 523264
      %v915 = vsel %vm914, %v913, %v907
      %vm916 = vcmask 785408
      %v917 = vsel %vm916, %v915, %v911
      %918 = vst [vmem:[%s338] sm:$0xff] %v917
      %p919 = scmp.lt.s32.totalorder %s20, 1
      %s920 = scalar_select %p919, %s20, 1
      %p921 = scmp.lt.s32.totalorder %s21, 0
      %s922 = scalar_select %p921, %s21, 0
      %s923 = sadd.s32 %s922, %s920
      %s924 = smul.addr %s923, 8
      %s925 = scalar_lea.vmem %s4, %s924
      // Predicated region
      $region37: #{opt_attention_forward.4} parent=35 // pred_check
        %p926 = pneg %p166
      $region38: #{opt_attention_forward.4} parent=35 // pred_check_branch
        %928 = sbr.rel (%p926) target = $region40
      $region39: #{opt_attention_forward.4} parent=35 // pred_region
        _
      $region40: #{opt_attention_forward.4} parent=35 // pred_fallthru
        _
    $region36: #{opt_attention_forward.4} parent=5 // pred_fallthru
      _
    %p929 = scmp.le.s32.totalorder 2, %s10
    // Predicated region
    $region41: #{opt_attention_forward.4} parent=5 // pred_check
      %p930 = pneg %p929
    $region42: #{opt_attention_forward.4} parent=5 // pred_check_branch
      %932 = sbr.rel (%p930) target = $region44
    $region43: #{opt_attention_forward.4} parent=5 // pred_region
      %s933 = ssub.s32 %s10, 2
      // Predicated region
      $region45: #{opt_attention_forward.4} parent=43 // pred_check
        %p934 = pneg %p172
      $region46: #{opt_attention_forward.4} parent=43 // pred_check_branch
        %936 = sbr.rel (%p934) target = $region48
      $region47: #{opt_attention_forward.4} parent=43 // pred_region
        %p937 = scmp.lt.s32.totalorder %s23, 1
        %s938 = scalar_select %p937, %s23, 1
        %p939 = scmp.lt.s32.totalorder %s24, 0
        %s940 = scalar_select %p939, %s24, 0
        %s941 = sadd.s32 %s940, %s938
        %s942 = smul.addr %s941, 8
        %s943 = scalar_lea.vmem %s4, %s942
      $region48: #{opt_attention_forward.4} parent=43 // pred_fallthru
        _
    $region44: #{opt_attention_forward.4} parent=5 // pred_fallthru
      _
  $region6: #{opt_attention_forward.4} parent=0 // loop_footer
    %s14 = sadd.s32 1, %s10
  $region7: #{opt_attention_forward.4} parent=0 // loop_footer_branch
    %9 = sbr.rel target = $region3
  $region8: #{opt_attention_forward.4} parent=0 // loop_exit
    _

</llo_original>
